<compile_context>
chip_gen: v5e
topology: v5e:2x2
jax: 0.10.0
libtpu: 0.0.40
codegen_flags: <defaults>
</compile_context>

<pallas_src>
import functools
import math

import jax
import jax.numpy as jnp
from jax import lax
from jax.experimental import pallas as pl
from jax.experimental.pallas import tpu as pltpu


# ---------------------------------------------------------------------------
# Per-generation tiling / VMEM configuration.
# ---------------------------------------------------------------------------
@functools.lru_cache(maxsize=1)
def _hw_config():
    """(row_tile_target, vmem_limit_bytes, min_grid_steps_per_parallel_axis)."""
    kind = ""
    try:
        kind = jax.devices()[0].device_kind.lower()
    except Exception:
        pass
    if "v7" in kind:          # 64 MiB VMEM / TensorCore, 2 TCs -> keep both busy
        return 256, 48 * 1024 * 1024, 2
    if "v6" in kind:          # 128 MiB VMEM: big row tiles pay off
        return 1024, 96 * 1024 * 1024, 1
    if "v5" in kind:
        return 256, 64 * 1024 * 1024, 1
    return 256, 48 * 1024 * 1024, 1


def _round_up(n, m):
    return ((n + m - 1) // m) * m


def _row_tile(rows, f32_cols_per_row):
    """Row tile: as large as the generation target / VMEM budget allows, while
    never leaving a v7x TensorCore idle for small inputs."""
    target, vmem_limit, min_steps = _hw_config()
    budget = vmem_limit // 2                        # headroom: weights + 2x buffers
    cap = max(16, (budget // (4 * max(f32_cols_per_row, 1))) // 16 * 16)
    need = _round_up(max(1, -(-rows // min_steps)), 16)
    need = min(need, _round_up(rows, 8))
    return max(8, min(target, cap, need))


def _head_tile(num_heads, head_dim, seq):
    """Head tile for the lane-dense attention path.

    Largest divisor hb of num_heads (<= 8) whose output slab width hb*head_dim
    is a multiple of 128 lanes and whose per-step f32 temporaries (scores +
    probs ~ 2*S^2*4 B per head) fit the per-generation VMEM budget; None if no
    lane-dense tile exists (small / unaligned head_dim).
    """
    _, vmem_limit, _ = _hw_config()
    budget = vmem_limit // 3
    per_head = 2 * seq * seq * 4 + 8 * seq * head_dim * 4
    cap = max(1, budget // per_head)
    valid = [hb for hb in range(1, min(num_heads, 8) + 1)
             if num_heads % hb == 0 and (hb * head_dim) % 128 == 0]
    if not valid:
        return None
    fitting = [hb for hb in valid if hb <= cap]
    # TODO(synk): for very long sequences add a query-tile grid axis with a
    # flash-style online softmax instead of only shrinking the head tile.
    return max(fitting) if fitting else min(valid)


# ---------------------------------------------------------------------------
# Resident (grid-invariant) operands: single-buffer them when supported.
# ---------------------------------------------------------------------------
@functools.lru_cache(maxsize=1)
def _single_buffer_supported():
    """AOT probe (lower + compile a trivial kernel, never run the real ones):
    can resident operands be single-buffered via pipeline_mode=pl.Buffered(1)?"""
    def _probe_kernel(x_ref, w_ref, o_ref):
        o_ref[...] = x_ref[...] + w_ref[...]

    try:
        resident = pl.BlockSpec((8, 128), lambda i: (0, 0),
                                pipeline_mode=pl.Buffered(1))
        call = pl.pallas_call(
            _probe_kernel,
            out_shape=jax.ShapeDtypeStruct((16, 128), jnp.float32),
            grid_spec=pltpu.PrefetchScalarGridSpec(
                num_scalar_prefetch=0, grid=(2,),
                in_specs=[pl.BlockSpec((8, 128), lambda i: (i, 0)), resident],
                out_specs=pl.BlockSpec((8, 128), lambda i: (i, 0))),
        )
        x = jax.ShapeDtypeStruct((16, 128), jnp.float32)
        w = jax.ShapeDtypeStruct((8, 128), jnp.float32)
        jax.jit(call).lower(x, w).compile()
        return True
    except Exception:                      # depends on jax/libtpu version
        return False


def _resident_spec(block_shape, single_buffer):
    ndim = len(block_shape)
    index_map = lambda *args, _n=ndim: (0,) * _n
    if single_buffer:
        # Weights / biases / LN params never change across grid steps: one VMEM
        # buffer is enough (saves a duplicate copy of every resident weight).
        return pl.BlockSpec(block_shape, index_map, pipeline_mode=pl.Buffered(1))
    return pl.BlockSpec(block_shape, index_map)


# ---------------------------------------------------------------------------
# Kernel bodies.
# ---------------------------------------------------------------------------
_GELU_C = math.sqrt(2.0 / math.pi)


def _gelu(y):
    # TODO(synk): tanh-approximate GELU; swap in erf-exact if config.hidden_act
    # maps to the exact variant (difference ~1e-3).
    return 0.5 * y * (1.0 + jnp.tanh(_GELU_C * (y + 0.044715 * y * y * y)))


def _layer_norm(z, gamma, beta, eps):
    # Two-pass mean / variance in f32 (avoids E[z^2]-mean^2 cancellation).
    mean = jnp.mean(z, axis=-1, keepdims=True)
    d = z - mean
    var = jnp.mean(d * d, axis=-1, keepdims=True)
    return d * lax.rsqrt(var + eps) * gamma + beta


def _qkv_dense_kernel(x_ref, w_ref, b_ref, o_ref):
    # y = x @ W (weights pre-transposed to [in, out] and pre-cast to bf16).
    x = x_ref[...].astype(jnp.bfloat16)
    y = jnp.dot(x, w_ref[...], preferred_element_type=jnp.float32)
    o_ref[...] = (y + b_ref[...]).astype(o_ref.dtype)


def _self_drn_kernel(h_ref, x_ref, w_ref, b_ref, g_ref, beta_ref, o_ref, *, eps):
    # dense (bf16 MXU operands, f32 accumulation) + residual + LayerNorm.
    y = jnp.dot(h_ref[...].astype(jnp.bfloat16), w_ref[...],
                preferred_element_type=jnp.float32)
    # TODO(synk): dropout omitted (eval-mode identity).
    z = y + b_ref[...] + x_ref[...].astype(jnp.float32)
    o_ref[...] = _layer_norm(z, g_ref[...], beta_ref[...], eps).astype(o_ref.dtype)


def _ffn_drn_kernel(h_ref, wi_ref, bi_ref, wo_ref, bo_ref, g_ref, beta_ref,
                    o_ref, *, eps):
    # Fused BertActivation + BertDRN: the [row_tile, intermediate] activation
    # never leaves VMEM.
    # TODO(synk): K-tile the second matmul for very large intermediate sizes.
    h = h_ref[...].astype(jnp.float32)
    y = jnp.dot(h.astype(jnp.bfloat16), wi_ref[...],
                preferred_element_type=jnp.float32)
    y = _gelu(y + bi_ref[...])
    z = jnp.dot(y.astype(jnp.bfloat16), wo_ref[...],
                preferred_element_type=jnp.float32)
    z = z + bo_ref[...] + h
    o_ref[...] = _layer_norm(z, g_ref[...], beta_ref[...], eps).astype(o_ref.dtype)


def _mha_block(q, k, v, m, o_ref, *, head_dim):
    """Per-head softmax attention on (S, n*Dh) bf16 slabs.

    q is already scaled by 1/sqrt(Dh) (folded into the QKV projection).
    """
    n = q.shape[-1] // head_dim
    for i in range(n):
        sl = slice(i * head_dim, (i + 1) * head_dim)
        s = lax.dot_general(q[:, sl], k[:, sl],
                            dimension_numbers=(((1,), (1,)), ((), ())),
                            preferred_element_type=jnp.float32)      # (S, S)
        s = s + m                                                    # additive mask
        s = s - jnp.max(s, axis=-1, keepdims=True)
        p = jnp.exp(s)
        denom = jnp.sum(p, axis=-1, keepdims=True)
        # TODO(synk): attention-probs dropout omitted (eval-mode identity);
        # the output_attentions=True attention map is not produced.
        ctx = lax.dot_general(p.astype(v.dtype), v[:, sl],
                              dimension_numbers=(((1,), (0,)), ((), ())),
                              preferred_element_type=jnp.float32)    # (S, Dh)
        ctx = ctx * pl.reciprocal(denom, approx=True)                # EUP slot
        o_ref[:, sl] = ctx.astype(o_ref.dtype)


def _attn_tiled_kernel(q_ref, k_ref, v_ref, m_ref, o_ref, *, head_dim):
    _mha_block(q_ref[...], k_ref[...], v_ref[...],
               m_ref[...].astype(jnp.float32), o_ref, head_dim=head_dim)


def _attn_full_kernel(qkv_ref, m_ref, o_ref, *, head_dim, hidden):
    qkv = qkv_ref[...]
    _mha_block(qkv[:, :hidden], qkv[:, hidden:2 * hidden], qkv[:, 2 * hidden:],
               m_ref[...].astype(jnp.float32), o_ref, head_dim=head_dim)


# ---------------------------------------------------------------------------
# pallas_call builders (constructed once per static shape via lru_cache).
# ---------------------------------------------------------------------------
@functools.lru_cache(maxsize=None)
def _build_qkv_dense(rows, h_in, h_out, row_tile, out_dtype, single_buffer):
    _, vmem_limit, _ = _hw_config()
    return pl.pallas_call(
        _qkv_dense_kernel,
        out_shape=jax.ShapeDtypeStruct((rows, h_out), jnp.dtype(out_dtype)),
        grid_spec=pltpu.PrefetchScalarGridSpec(
            num_scalar_prefetch=0, grid=(pl.cdiv(rows, row_tile),),
            in_specs=[
                pl.BlockSpec((row_tile, h_in), lambda i: (i, 0)),
                _resident_spec((h_in, h_out), single_buffer),
                _resident_spec((1, h_out), single_buffer),
            ],
            out_specs=pl.BlockSpec((row_tile, h_out), lambda i: (i, 0)),
        ),
        compiler_params=pltpu.CompilerParams(
            dimension_semantics=("parallel",), vmem_limit_bytes=vmem_limit),
    )


@functools.lru_cache(maxsize=None)
def _build_self_drn(rows, hidden, row_tile, out_dtype, eps, single_buffer):
    _, vmem_limit, _ = _hw_config()
    return pl.pallas_call(
        functools.partial(_self_drn_kernel, eps=eps),
        out_shape=jax.ShapeDtypeStruct((rows, hidden), jnp.dtype(out_dtype)),
        grid_spec=pltpu.PrefetchScalarGridSpec(
            num_scalar_prefetch=0, grid=(pl.cdiv(rows, row_tile),),
            in_specs=[
                pl.BlockSpec((row_tile, hidden), lambda i: (i, 0)),
                pl.BlockSpec((row_tile, hidden), lambda i: (i, 0)),
                _resident_spec((hidden, hidden), single_buffer),
                _resident_spec((1, hidden), single_buffer),
                _resident_spec((1, hidden), single_buffer),
                _resident_spec((1, hidden), single_buffer),
            ],
            out_specs=pl.BlockSpec((row_tile, hidden), lambda i: (i, 0)),
        ),
        compiler_params=pltpu.CompilerParams(
            dimension_semantics=("parallel",), vmem_limit_bytes=vmem_limit),
    )


@functools.lru_cache(maxsize=None)
def _build_ffn_drn(rows, hidden, inter, row_tile, out_dtype, eps, single_buffer):
    _, vmem_limit, _ = _hw_config()
    return pl.pallas_call(
        functools.partial(_ffn_drn_kernel, eps=eps),
        out_shape=jax.ShapeDtypeStruct((rows, hidden), jnp.dtype(out_dtype)),
        grid_spec=pltpu.PrefetchScalarGridSpec(
            num_scalar_prefetch=0, grid=(pl.cdiv(rows, row_tile),),
            in_specs=[
                pl.BlockSpec((row_tile, hidden), lambda i: (i, 0)),
                _resident_spec((hidden, inter), single_buffer),
                _resident_spec((1, inter), single_buffer),
                _resident_spec((inter, hidden), single_buffer),
                _resident_spec((1, hidden), single_buffer),
                _resident_spec((1, hidden), single_buffer),
                _resident_spec((1, hidden), single_buffer),
            ],
            out_specs=pl.BlockSpec((row_tile, hidden), lambda i: (i, 0)),
        ),
        compiler_params=pltpu.CompilerParams(
            dimension_semantics=("parallel",), vmem_limit_bytes=vmem_limit),
    )


@functools.lru_cache(maxsize=None)
def _build_attn_tiled(batch, seq, num_heads, head_dim, heads_blk, out_dtype):
    """Lane-dense path: per-(batch, head-tile) blocks read straight from the
    [rows, 3H] QKV tensor; context written lane-dense into [rows, H]."""
    hidden = num_heads * head_dim
    gd = heads_blk * head_dim
    gblocks = num_heads // heads_blk
    rows = batch * seq
    _, vmem_limit, _ = _hw_config()
    return pl.pallas_call(
        functools.partial(_attn_tiled_kernel, head_dim=head_dim),
        out_shape=jax.ShapeDtypeStruct((rows, hidden), jnp.dtype(out_dtype)),
        grid_spec=pltpu.PrefetchScalarGridSpec(
            num_scalar_prefetch=0, grid=(batch, gblocks),
            in_specs=[
                pl.BlockSpec((seq, gd), lambda b, h: (b, h)),
                pl.BlockSpec((seq, gd), lambda b, h, g=gblocks: (b, g + h)),
                pl.BlockSpec((seq, gd), lambda b, h, g=gblocks: (b, 2 * g + h)),
                pl.BlockSpec((None, 1, seq), lambda b, h: (b, 0, 0)),
            ],
            out_specs=pl.BlockSpec((seq, gd), lambda b, h: (b, h)),
        ),
        compiler_params=pltpu.CompilerParams(
            dimension_semantics=("parallel", "parallel"),
            vmem_limit_bytes=vmem_limit),
    )


@functools.lru_cache(maxsize=None)
def _build_attn_full(batch, seq, num_heads, head_dim, out_dtype):
    """Fallback path (small / unaligned head_dim): whole (S, 3H) slab per
    batch, static loop over all heads inside the kernel."""
    hidden = num_heads * head_dim
    _, vmem_limit, _ = _hw_config()
    return pl.pallas_call(
        functools.partial(_attn_full_kernel, head_dim=head_dim, hidden=hidden),
        out_shape=jax.ShapeDtypeStruct((batch, seq, hidden), jnp.dtype(out_dtype)),
        grid_spec=pltpu.PrefetchScalarGridSpec(
            num_scalar_prefetch=0, grid=(batch,),
            in_specs=[
                pl.BlockSpec((None, seq, 3 * hidden), lambda b: (b, 0, 0)),
                pl.BlockSpec((None, 1, seq), lambda b: (b, 0, 0)),
            ],
            out_specs=pl.BlockSpec((None, seq, hidden), lambda b: (b, 0, 0)),
        ),
        compiler_params=pltpu.CompilerParams(
            dimension_semantics=("parallel",), vmem_limit_bytes=vmem_limit),
    )


def _attention(qkv, mask3, batch, seq, num_heads, head_dim):
    hidden = num_heads * head_dim
    hb = _head_tile(num_heads, head_dim, seq)
    if hb is not None and seq % 8 == 0:
        attn = _build_attn_tiled(batch, seq, num_heads, head_dim, hb, "bfloat16")
        return attn(qkv, qkv, qkv, mask3)                          # [rows, H] bf16
    attn = _build_attn_full(batch, seq, num_heads, head_dim, "bfloat16")
    ctx3 = attn(qkv.reshape(batch, seq, 3 * hidden), mask3)        # [B, S, H]
    return ctx3.reshape(batch * seq, hidden)


# ---------------------------------------------------------------------------
# Parameter preprocessing (one-time) and jitted forward.
# ---------------------------------------------------------------------------
def prepare_params(raw, *, num_heads, mxu_dtype=jnp.bfloat16):
    """One-time preprocessing of PyTorch-layout parameters: transpose weights
    to [in, out], cast to bf16 (MXU operand dtype), fuse the Q/K/V projections
    and fold the 1/sqrt(head_dim) scale into the Q weights/bias."""
    hidden = raw["q_w"].shape[1]
    scale = 1.0 / math.sqrt(hidden // num_heads)
    f32 = jnp.float32
    wqkv = jnp.concatenate([raw["q_w"] * scale, raw["k_w"], raw["v_w"]],
                           axis=0).T.astype(mxu_dtype)
    bqkv = jnp.concatenate([raw["q_b"] * scale, raw["k_b"], raw["v_b"]],
                           axis=0).reshape(1, -1).astype(f32)
    return {
        "wqkv": wqkv, "bqkv": bqkv,
        "w_ao": raw["ao_w"].T.astype(mxu_dtype),
        "b_ao": raw["ao_b"].reshape(1, -1).astype(f32),
        "g_ao": raw["ao_g"].reshape(1, -1).astype(f32),
        "beta_ao": raw["ao_beta"].reshape(1, -1).astype(f32),
        "w_ff_i": raw["ff_i_w"].T.astype(mxu_dtype),
        "b_ff_i": raw["ff_i_b"].reshape(1, -1).astype(f32),
        "w_ff_o": raw["ff_o_w"].T.astype(mxu_dtype),
        "b_ff_o": raw["ff_o_b"].reshape(1, -1).astype(f32),
        "g_ff": raw["ff_o_g"].reshape(1, -1).astype(f32),
        "beta_ff": raw["ff_o_beta"].reshape(1, -1).astype(f32),
    }


def _forward_impl(params, x, mask, *, num_heads, eps, single_buffer):
    B, S, H = x.shape
    head_dim = H // num_heads
    rows = B * S
    out_dtype = str(x.dtype)
    x2 = x.reshape(rows, H)
    mask3 = mask.reshape(B, 1, S)          # additive key mask (per-key only)

    # 1) fused QKV projection -> bf16 [rows, 3H] (only ever an MXU LHS).
    rt = _row_tile(rows, 8 * H)
    qkv = _build_qkv_dense(rows, H, 3 * H, rt, "bfloat16", single_buffer)(
        x2, params["wqkv"], params["bqkv"])

    # 2) multi-head self-attention (softmax scale pre-folded into Q weights).
    ctx = _attention(qkv, mask3, B, S, num_heads, head_dim)

    # 3) BertSelfDRN: dense + residual(add input) + LayerNorm.
    rt = _row_tile(rows, 8 * H)
    attn_out = _build_self_drn(rows, H, rt, out_dtype, eps, single_buffer)(
        ctx, x2, params["w_ao"], params["b_ao"], params["g_ao"], params["beta_ao"])

    # 4) BertActivation + BertDRN fused: dense+GELU, dense + residual + LN.
    inter = params["w_ff_i"].shape[1]
    rt = _row_tile(rows, 4 * H + 4 * inter)
    out2 = _build_ffn_drn(rows, H, inter, rt, out_dtype, eps, single_buffer)(
        attn_out, params["w_ff_i"], params["b_ff_i"], params["w_ff_o"],
        params["b_ff_o"], params["g_ff"], params["beta_ff"])

    return out2.reshape(B, S, H)


_forward_jit = jax.jit(_forward_impl,
                       static_argnames=("num_heads", "eps", "single_buffer"))


def bert_layer_forward(params, query_tokens, self_mask=None, *, num_heads,
                       eps=1e-12):
    """BertLayer.forward (eval).  `params` must come from prepare_params().

    Returns (layer_output, self_attn_map=None, cross_attn_map=None).
    """
    B, S, _ = query_tokens.shape
    if self_mask is None:
        self_mask = jnp.zeros((B, 1, 1, S), query_tokens.dtype)
    # TODO(synk): cross-attention branch, relative position embeddings,
    # per-query (e.g. causal) masks and output_attentions are not implemented.
    out = _forward_jit(params, query_tokens, self_mask,
                       num_heads=num_heads, eps=float(eps),
                       single_buffer=_single_buffer_supported())
    return out, None, None


# ---------------------------------------------------------------------------
# Pure-JAX f32 reference mirroring the PyTorch module in eval mode.
# ---------------------------------------------------------------------------
def bert_layer_reference(params, x, mask, *, num_heads, eps=1e-12):
    B, S, H = x.shape
    dh = H // num_heads

    def dense(t, w, b):
        return jnp.einsum("...i,oi->...o", t, w) + b

    def layer_norm(t, g, b):
        m = jnp.mean(t, axis=-1, keepdims=True)
        v = jnp.mean((t - m) ** 2, axis=-1, keepdims=True)
        return (t - m) * lax.rsqrt(v + eps) * g + b

    def heads(t):
        return t.reshape(B, S, num_heads, dh).transpose(0, 2, 1, 3)

    q = heads(dense(x, params["q_w"], params["q_b"]))
    k = heads(dense(x, params["k_w"], params["k_b"]))
    v = heads(dense(x, params["v_w"], params["v_b"]))
    s = jnp.einsum("bhqd,bhkd->bhqk", q, k) / math.sqrt(dh)
    if mask is not None:
        s = s + mask
    p = jax.nn.softmax(s, axis=-1)
    ctx = jnp.einsum("bhqk,bhkd->bhqd", p, v).transpose(0, 2, 1, 3).reshape(B, S, H)

    attn_out = layer_norm(dense(ctx, params["ao_w"], params["ao_b"]) + x,
                          params["ao_g"], params["ao_beta"])
    inter = _gelu(dense(attn_out, params["ff_i_w"], params["ff_i_b"]))
    return layer_norm(dense(inter, params["ff_o_w"], params["ff_o_b"]) + attn_out,
                      params["ff_o_g"], params["ff_o_beta"])


if __name__ == "__main__":
    B, S, H, NH, INTER = 2, 8, 32, 4, 64   # batch, seq, query_size, heads, intermediate
    key = jax.random.PRNGKey(0)
    ks = jax.random.split(key, 14)

    def init(k, shape, scale=0.02):
        return scale * jax.random.normal(k, shape, dtype=jnp.float32)

    raw = {
        "q_w": init(ks[0], (H, H)),   "q_b": init(ks[1], (H,)),
        "k_w": init(ks[2], (H, H)),   "k_b": init(ks[3], (H,)),
        "v_w": init(ks[4], (H, H)),   "v_b": init(ks[5], (H,)),
        "ao_w": init(ks[6], (H, H)),  "ao_b": init(ks[7], (H,)),
        "ao_g": jnp.ones((H,), jnp.float32), "ao_beta": jnp.zeros((H,), jnp.float32),
        "ff_i_w": init(ks[8], (INTER, H)),  "ff_i_b": init(ks[9], (INTER,)),
        "ff_o_w": init(ks[10], (H, INTER)), "ff_o_b": init(ks[11], (H,)),
        "ff_o_g": jnp.ones((H,), jnp.float32), "ff_o_beta": jnp.zeros((H,), jnp.float32),
    }
    params = prepare_params(raw, num_heads=NH)

    x = jax.random.normal(ks[12], (B, S, H), dtype=jnp.float32)
    # Additive attention mask: batch 1 has its last two key positions masked out.
    valid = jnp.ones((B, S), jnp.float32).at[1, -2:].set(0.0)
    self_mask = (1.0 - valid)[:, None, None, :] * -1e4          # [B, 1, 1, S]

    out, _, _ = bert_layer_forward(params, x, self_mask, num_heads=NH, eps=1e-12)
    out = jax.block_until_ready(out)

    ref = bert_layer_reference(raw, x, self_mask, num_heads=NH, eps=1e-12)
    assert out.shape == (B, S, H)
    max_err = float(jnp.max(jnp.abs(out - ref)))
    # bf16 MXU operands (f32 accumulation) + approximate reciprocal vs the f32
    # reference -> loosened tolerance (documented for downstream consumers).
    assert max_err < 3e-2, f"mismatch vs reference: max abs err {max_err}"
    print("KERNEL_OK")
</pallas_src>

<mosaic_0001>
module attributes {stable_mosaic.version = 11 : i64} {
  func.func @_qkv_dense_kernel(%arg0: i32, %arg1: memref<16x32xf32, #tpu.memory_space<vmem>>, %arg2: memref<32x96xbf16, #tpu.memory_space<vmem>>, %arg3: memref<1x96xf32, #tpu.memory_space<vmem>>, %arg4: memref<16x96xbf16, #tpu.memory_space<vmem>>) attributes {dimension_semantics = [#tpu.dimension_semantics<parallel>], iteration_bounds = array<i64: 1>, scalar_prefetch = 0 : i64, scratch_operands = 0 : i64, tpu.core_type = #tpu.core_type<tc>, window_params = [{transform_indices = @transform_0, window_bounds = array<i64: 16, 32>}, {pipeline_mode = #tpu.pipeline_mode<synchronous>, transform_indices = @transform_1, window_bounds = array<i64: 32, 96>}, {pipeline_mode = #tpu.pipeline_mode<synchronous>, transform_indices = @transform_2, window_bounds = array<i64: 1, 96>}, {transform_indices = @transform_3, window_bounds = array<i64: 16, 96>}]} {
    %c0 = arith.constant 0 : index
    %c0_0 = arith.constant 0 : index
    %0 = vector.load %arg1[%c0, %c0_0] : memref<16x32xf32, #tpu.memory_space<vmem>>, vector<16x32xf32>
    %1 = arith.truncf %0 : vector<16x32xf32> to vector<16x32xbf16>
    %c0_1 = arith.constant 0 : index
    %c0_2 = arith.constant 0 : index
    %2 = vector.load %arg2[%c0_1, %c0_2] : memref<32x96xbf16, #tpu.memory_space<vmem>>, vector<32x96xbf16>
    %cst = arith.constant dense<0.000000e+00> : vector<16x96xf32>
    %3 = tpu.matmul %1, %2, %cst {dimension_numbers = #tpu.dot_dimension_numbers<[1], [0], [0], [1], [0, 0, 1, 1], [], []>} : vector<16x32xbf16>, vector<32x96xbf16>, vector<16x96xf32> -> vector<16x96xf32>
    %c0_3 = arith.constant 0 : index
    %c0_4 = arith.constant 0 : index
    %4 = vector.load %arg3[%c0_3, %c0_4] : memref<1x96xf32, #tpu.memory_space<vmem>>, vector<1x96xf32>
    %5 = vector.broadcast %4 : vector<1x96xf32> to vector<16x96xf32>
    %6 = arith.addf %3, %5 : vector<16x96xf32>
    %7 = arith.truncf %6 : vector<16x96xf32> to vector<16x96xbf16>
    %c0_5 = arith.constant 0 : index
    %c0_6 = arith.constant 0 : index
    %8 = vector.load %arg4[%c0_5, %c0_6] : memref<16x96xbf16, #tpu.memory_space<vmem>>, vector<16x96xbf16>
    tpu.vector_store %arg4[%c0_5, %c0_6], %7 {strides = array<i32>} : memref<16x96xbf16, #tpu.memory_space<vmem>>, vector<16x96xbf16>,
    return
  }
  func.func @transform_0(%arg0: i32) -> (i32, i32) {
    %c0_i32 = arith.constant 0 : i32
    %c0_i32_0 = arith.constant 0 : i32
    return %arg0, %c0_i32 : i32, i32
  }
  func.func @transform_1(%arg0: i32) -> (i32, i32) {
    %c0_i32 = arith.constant 0 : i32
    %c0_i32_0 = arith.constant 0 : i32
    %c0_i32_1 = arith.constant 0 : i32
    return %c0_i32, %c0_i32_0 : i32, i32
  }
  func.func @transform_2(%arg0: i32) -> (i32, i32) {
    %c0_i32 = arith.constant 0 : i32
    %c0_i32_0 = arith.constant 0 : i32
    %c0_i32_1 = arith.constant 0 : i32
    return %c0_i32, %c0_i32_0 : i32, i32
  }
  func.func @transform_3(%arg0: i32) -> (i32, i32) {
    %c0_i32 = arith.constant 0 : i32
    %c0_i32_0 = arith.constant 0 : i32
    return %arg0, %c0_i32 : i32, i32
  }
}

module attributes {stable_mosaic.version = 11 : i64} {
  func.func @_self_drn_kernel(%arg0: i32, %arg1: memref<16x32xbf16, #tpu.memory_space<vmem>>, %arg2: memref<16x32xf32, #tpu.memory_space<vmem>>, %arg3: memref<32x32xbf16, #tpu.memory_space<vmem>>, %arg4: memref<1x32xf32, #tpu.memory_space<vmem>>, %arg5: memref<1x32xf32, #tpu.memory_space<vmem>>, %arg6: memref<1x32xf32, #tpu.memory_space<vmem>>, %arg7: memref<16x32xf32, #tpu.memory_space<vmem>>) attributes {dimension_semantics = [#tpu.dimension_semantics<parallel>], iteration_bounds = array<i64: 1>, scalar_prefetch = 0 : i64, scratch_operands = 0 : i64, tpu.core_type = #tpu.core_type<tc>, window_params = [{transform_indices = @transform_0, window_bounds = array<i64: 16, 32>}, {transform_indices = @transform_1, window_bounds = array<i64: 16, 32>}, {pipeline_mode = #tpu.pipeline_mode<synchronous>, transform_indices = @transform_2, window_bounds = array<i64: 32, 32>}, {pipeline_mode = #tpu.pipeline_mode<synchronous>, transform_indices = @transform_3, window_bounds = array<i64: 1, 32>}, {pipeline_mode = #tpu.pipeline_mode<synchronous>, transform_indices = @transform_4, window_bounds = array<i64: 1, 32>}, {pipeline_mode = #tpu.pipeline_mode<synchronous>, transform_indices = @transform_5, window_bounds = array<i64: 1, 32>}, {transform_indices = @transform_6, window_bounds = array<i64: 16, 32>}]} {
    %c0 = arith.constant 0 : index
    %c0_0 = arith.constant 0 : index
    %0 = vector.load %arg1[%c0, %c0_0] : memref<16x32xbf16, #tpu.memory_space<vmem>>, vector<16x32xbf16>
    %c0_1 = arith.constant 0 : index
    %c0_2 = arith.constant 0 : index
    %1 = vector.load %arg3[%c0_1, %c0_2] : memref<32x32xbf16, #tpu.memory_space<vmem>>, vector<32x32xbf16>
    %cst = arith.constant dense<0.000000e+00> : vector<16x32xf32>
    %2 = tpu.matmul %0, %1, %cst {dimension_numbers = #tpu.dot_dimension_numbers<[1], [0], [0], [1], [0, 0, 1, 1], [], []>} : vector<16x32xbf16>, vector<32x32xbf16>, vector<16x32xf32> -> vector<16x32xf32>
    %c0_3 = arith.constant 0 : index
    %c0_4 = arith.constant 0 : index
    %3 = vector.load %arg4[%c0_3, %c0_4] : memref<1x32xf32, #tpu.memory_space<vmem>>, vector<1x32xf32>
    %4 = vector.broadcast %3 : vector<1x32xf32> to vector<16x32xf32>
    %5 = arith.addf %2, %4 : vector<16x32xf32>
    %c0_5 = arith.constant 0 : index
    %c0_6 = arith.constant 0 : index
    %6 = vector.load %arg2[%c0_5, %c0_6] : memref<16x32xf32, #tpu.memory_space<vmem>>, vector<16x32xf32>
    %7 = arith.addf %5, %6 : vector<16x32xf32>
    %c0_7 = arith.constant 0 : index
    %c0_8 = arith.constant 0 : index
    %8 = vector.load %arg5[%c0_7, %c0_8] : memref<1x32xf32, #tpu.memory_space<vmem>>, vector<1x32xf32>
    %c0_9 = arith.constant 0 : index
    %c0_10 = arith.constant 0 : index
    %9 = vector.load %arg6[%c0_9, %c0_10] : memref<1x32xf32, #tpu.memory_space<vmem>>, vector<1x32xf32>
    %cst_11 = arith.constant dense<0.000000e+00> : vector<16xf32>
    %10 = vector.multi_reduction <add>, %7, %cst_11 [1] : vector<16x32xf32> to vector<16xf32>
    %11 = vector.shape_cast %10 : vector<16xf32> to vector<16x1xf32>
    %cst_12 = arith.constant 3.200000e+01 : f32
    %12 = vector.broadcast %cst_12 : f32 to vector<16x1xf32>
    %13 = arith.divf %11, %12 : vector<16x1xf32>
    %14 = vector.broadcast %13 : vector<16x1xf32> to vector<16x32xf32>
    %15 = arith.subf %7, %14 : vector<16x32xf32>
    %16 = arith.mulf %15, %15 : vector<16x32xf32>
    %cst_13 = arith.constant dense<0.000000e+00> : vector<16xf32>
    %17 = vector.multi_reduction <add>, %16, %cst_13 [1] : vector<16x32xf32> to vector<16xf32>
    %18 = vector.shape_cast %17 : vector<16xf32> to vector<16x1xf32>
    %cst_14 = arith.constant 3.200000e+01 : f32
    %19 = vector.broadcast %cst_14 : f32 to vector<16x1xf32>
    %20 = arith.divf %18, %19 : vector<16x1xf32>
    %cst_15 = arith.constant 9.99999996E-13 : f32
    %21 = vector.broadcast %cst_15 : f32 to vector<16x1xf32>
    %22 = arith.addf %20, %21 : vector<16x1xf32>
    %23 = math.rsqrt %22 : vector<16x1xf32>
    %24 = vector.broadcast %23 : vector<16x1xf32> to vector<16x32xf32>
    %25 = arith.mulf %15, %24 : vector<16x32xf32>
    %26 = vector.broadcast %8 : vector<1x32xf32> to vector<16x32xf32>
    %27 = arith.mulf %25, %26 : vector<16x32xf32>
    %28 = vector.broadcast %9 : vector<1x32xf32> to vector<16x32xf32>
    %29 = arith.addf %27, %28 : vector<16x32xf32>
    %c0_16 = arith.constant 0 : index
    %c0_17 = arith.constant 0 : index
    %30 = vector.load %arg7[%c0_16, %c0_17] : memref<16x32xf32, #tpu.memory_space<vmem>>, vector<16x32xf32>
    tpu.vector_store %arg7[%c0_16, %c0_17], %29 {strides = array<i32>} : memref<16x32xf32, #tpu.memory_space<vmem>>, vector<16x32xf32>,
    return
  }
  func.func @transform_0(%arg0: i32) -> (i32, i32) {
    %c0_i32 = arith.constant 0 : i32
    %c0_i32_0 = arith.constant 0 : i32
    return %arg0, %c0_i32 : i32, i32
  }
  func.func @transform_1(%arg0: i32) -> (i32, i32) {
    %c0_i32 = arith.constant 0 : i32
    %c0_i32_0 = arith.constant 0 : i32
    return %arg0, %c0_i32 : i32, i32
  }
  func.func @transform_2(%arg0: i32) -> (i32, i32) {
    %c0_i32 = arith.constant 0 : i32
    %c0_i32_0 = arith.constant 0 : i32
    %c0_i32_1 = arith.constant 0 : i32
    return %c0_i32, %c0_i32_0 : i32, i32
  }
  func.func @transform_3(%arg0: i32) -> (i32, i32) {
    %c0_i32 = arith.constant 0 : i32
    %c0_i32_0 = arith.constant 0 : i32
    %c0_i32_1 = arith.constant 0 : i32
    return %c0_i32, %c0_i32_0 : i32, i32
  }
  func.func @transform_4(%arg0: i32) -> (i32, i32) {
    %c0_i32 = arith.constant 0 : i32
    %c0_i32_0 = arith.constant 0 : i32
    %c0_i32_1 = arith.constant 0 : i32
    return %c0_i32, %c0_i32_0 : i32, i32
  }
  func.func @transform_5(%arg0: i32) -> (i32, i32) {
    %c0_i32 = arith.constant 0 : i32
    %c0_i32_0 = arith.constant 0 : i32
    %c0_i32_1 = arith.constant 0 : i32
    return %c0_i32, %c0_i32_0 : i32, i32
  }
  func.func @transform_6(%arg0: i32) -> (i32, i32) {
    %c0_i32 = arith.constant 0 : i32
    %c0_i32_0 = arith.constant 0 : i32
    return %arg0, %c0_i32 : i32, i32
  }
}

module attributes {stable_mosaic.version = 11 : i64} {
  func.func @_attn_full_kernel(%arg0: i32, %arg1: memref<1x8x96xbf16, #tpu.memory_space<vmem>>, %arg2: memref<1x1x8xf32, #tpu.memory_space<vmem>>, %arg3: memref<1x8x32xbf16, #tpu.memory_space<vmem>>) attributes {dimension_semantics = [#tpu.dimension_semantics<parallel>], iteration_bounds = array<i64: 2>, scalar_prefetch = 0 : i64, scratch_operands = 0 : i64, tpu.core_type = #tpu.core_type<tc>, window_params = [{transform_indices = @transform_0, window_bounds = array<i64: 1, 8, 96>}, {transform_indices = @transform_1, window_bounds = array<i64: 1, 1, 8>}, {transform_indices = @transform_2, window_bounds = array<i64: 1, 8, 32>}]} {
    %c0 = arith.constant 0 : index
    %c0_0 = arith.constant 0 : index
    %c0_1 = arith.constant 0 : index
    %0 = vector.load %arg1[%c0, %c0_0, %c0_1] : memref<1x8x96xbf16, #tpu.memory_space<vmem>>, vector<1x8x96xbf16>
    %1 = vector.shape_cast %0 : vector<1x8x96xbf16> to vector<8x96xbf16>
    %2 = vector.extract_strided_slice %1 {offsets = [0, 0], sizes = [8, 32], strides = [1, 1]} : vector<8x96xbf16> to vector<8x32xbf16>
    %3 = vector.extract_strided_slice %1 {offsets = [0, 32], sizes = [8, 32], strides = [1, 1]} : vector<8x96xbf16> to vector<8x32xbf16>
    %4 = vector.extract_strided_slice %1 {offsets = [0, 64], sizes = [8, 32], strides = [1, 1]} : vector<8x96xbf16> to vector<8x32xbf16>
    %c0_2 = arith.constant 0 : index
    %c0_3 = arith.constant 0 : index
    %c0_4 = arith.constant 0 : index
    %5 = vector.load %arg2[%c0_2, %c0_3, %c0_4] : memref<1x1x8xf32, #tpu.memory_space<vmem>>, vector<1x1x8xf32>
    %6 = vector.shape_cast %5 : vector<1x1x8xf32> to vector<1x8xf32>
    %7 = vector.extract_strided_slice %2 {offsets = [0, 0], sizes = [8, 8], strides = [1, 1]} : vector<8x32xbf16> to vector<8x8xbf16>
    %8 = vector.extract_strided_slice %3 {offsets = [0, 0], sizes = [8, 8], strides = [1, 1]} : vector<8x32xbf16> to vector<8x8xbf16>
    %cst = arith.constant dense<0.000000e+00> : vector<8x8xf32>
    %9 = tpu.matmul %7, %8, %cst {dimension_numbers = #tpu.dot_dimension_numbers<[1], [1], [0], [0], [0, 0, 1, 0], [], []>} : vector<8x8xbf16>, vector<8x8xbf16>, vector<8x8xf32> -> vector<8x8xf32>
    %10 = vector.broadcast %6 : vector<1x8xf32> to vector<8x8xf32>
    %11 = arith.addf %9, %10 : vector<8x8xf32>
    %cst_5 = arith.constant dense<0xFF800000> : vector<8xf32>
    %12 = vector.multi_reduction <maximumf>, %11, %cst_5 [1] : vector<8x8xf32> to vector<8xf32>
    %13 = vector.shape_cast %12 : vector<8xf32> to vector<8x1xf32>
    %14 = vector.broadcast %13 : vector<8x1xf32> to vector<8x8xf32>
    %15 = arith.subf %11, %14 : vector<8x8xf32>
    %16 = math.exp %15 : vector<8x8xf32>
    %cst_6 = arith.constant dense<0.000000e+00> : vector<8xf32>
    %17 = vector.multi_reduction <add>, %16, %cst_6 [1] : vector<8x8xf32> to vector<8xf32>
    %18 = vector.shape_cast %17 : vector<8xf32> to vector<8x1xf32>
    %19 = arith.truncf %16 : vector<8x8xf32> to vector<8x8xbf16>
    %20 = vector.extract_strided_slice %4 {offsets = [0, 0], sizes = [8, 8], strides = [1, 1]} : vector<8x32xbf16> to vector<8x8xbf16>
    %cst_7 = arith.constant dense<0.000000e+00> : vector<8x8xf32>
    %21 = tpu.matmul %19, %20, %cst_7 {dimension_numbers = #tpu.dot_dimension_numbers<[1], [0], [0], [1], [0, 0, 1, 1], [], []>} : vector<8x8xbf16>, vector<8x8xbf16>, vector<8x8xf32> -> vector<8x8xf32>
    %22 = tpu.reciprocal %18 {approx = true} : vector<8x1xf32> -> vector<8x1xf32>
    %23 = vector.broadcast %22 : vector<8x1xf32> to vector<8x8xf32>
    %24 = arith.mulf %21, %23 : vector<8x8xf32>
    %25 = arith.truncf %24 : vector<8x8xf32> to vector<8x8xbf16>
    %c0_8 = arith.constant 0 : index
    %c0_9 = arith.constant 0 : index
    %c0_10 = arith.constant 0 : index
    %26 = vector.load %arg3[%c0_8, %c0_9, %c0_10] : memref<1x8x32xbf16, #tpu.memory_space<vmem>>, vector<1x8x8xbf16>
    %27 = vector.shape_cast %26 : vector<1x8x8xbf16> to vector<8x8xbf16>
    %28 = vector.shape_cast %25 : vector<8x8xbf16> to vector<1x8x8xbf16>
    tpu.vector_store %arg3[%c0_8, %c0_9, %c0_10], %28 {strides = array<i32>} : memref<1x8x32xbf16, #tpu.memory_space<vmem>>, vector<1x8x8xbf16>,
    %29 = vector.extract_strided_slice %2 {offsets = [0, 8], sizes = [8, 8], strides = [1, 1]} : vector<8x32xbf16> to vector<8x8xbf16>
    %30 = vector.extract_strided_slice %3 {offsets = [0, 8], sizes = [8, 8], strides = [1, 1]} : vector<8x32xbf16> to vector<8x8xbf16>
    %cst_11 = arith.constant dense<0.000000e+00> : vector<8x8xf32>
    %31 = tpu.matmul %29, %30, %cst_11 {dimension_numbers = #tpu.dot_dimension_numbers<[1], [1], [0], [0], [0, 0, 1, 0], [], []>} : vector<8x8xbf16>, vector<8x8xbf16>, vector<8x8xf32> -> vector<8x8xf32>
    %32 = vector.broadcast %6 : vector<1x8xf32> to vector<8x8xf32>
    %33 = arith.addf %31, %32 : vector<8x8xf32>
    %cst_12 = arith.constant dense<0xFF800000> : vector<8xf32>
    %34 = vector.multi_reduction <maximumf>, %33, %cst_12 [1] : vector<8x8xf32> to vector<8xf32>
    %35 = vector.shape_cast %34 : vector<8xf32> to vector<8x1xf32>
    %36 = vector.broadcast %35 : vector<8x1xf32> to vector<8x8xf32>
    %37 = arith.subf %33, %36 : vector<8x8xf32>
    %38 = math.exp %37 : vector<8x8xf32>
    %cst_13 = arith.constant dense<0.000000e+00> : vector<8xf32>
    %39 = vector.multi_reduction <add>, %38, %cst_13 [1] : vector<8x8xf32> to vector<8xf32>
    %40 = vector.shape_cast %39 : vector<8xf32> to vector<8x1xf32>
    %41 = arith.truncf %38 : vector<8x8xf32> to vector<8x8xbf16>
    %42 = vector.extract_strided_slice %4 {offsets = [0, 8], sizes = [8, 8], strides = [1, 1]} : vector<8x32xbf16> to vector<8x8xbf16>
    %cst_14 = arith.constant dense<0.000000e+00> : vector<8x8xf32>
    %43 = tpu.matmul %41, %42, %cst_14 {dimension_numbers = #tpu.dot_dimension_numbers<[1], [0], [0], [1], [0, 0, 1, 1], [], []>} : vector<8x8xbf16>, vector<8x8xbf16>, vector<8x8xf32> -> vector<8x8xf32>
    %44 = tpu.reciprocal %40 {approx = true} : vector<8x1xf32> -> vector<8x1xf32>
    %45 = vector.broadcast %44 : vector<8x1xf32> to vector<8x8xf32>
    %46 = arith.mulf %43, %45 : vector<8x8xf32>
    %47 = arith.truncf %46 : vector<8x8xf32> to vector<8x8xbf16>
    %c0_15 = arith.constant 0 : index
    %c0_16 = arith.constant 0 : index
    %c8 = arith.constant 8 : index
    %48 = vector.load %arg3[%c0_15, %c0_16, %c8] : memref<1x8x32xbf16, #tpu.memory_space<vmem>>, vector<1x8x8xbf16>
    %49 = vector.shape_cast %48 : vector<1x8x8xbf16> to vector<8x8xbf16>
    %50 = vector.shape_cast %47 : vector<8x8xbf16> to vector<1x8x8xbf16>
    tpu.vector_store %arg3[%c0_15, %c0_16, %c8], %50 {strides = array<i32>} : memref<1x8x32xbf16, #tpu.memory_space<vmem>>, vector<1x8x8xbf16>,
    %51 = vector.extract_strided_slice %2 {offsets = [0, 16], sizes = [8, 8], strides = [1, 1]} : vector<8x32xbf16> to vector<8x8xbf16>
    %52 = vector.extract_strided_slice %3 {offsets = [0, 16], sizes = [8, 8], strides = [1, 1]} : vector<8x32xbf16> to vector<8x8xbf16>
    %cst_17 = arith.constant dense<0.000000e+00> : vector<8x8xf32>
    %53 = tpu.matmul %51, %52, %cst_17 {dimension_numbers = #tpu.dot_dimension_numbers<[1], [1], [0], [0], [0, 0, 1, 0], [], []>} : vector<8x8xbf16>, vector<8x8xbf16>, vector<8x8xf32> -> vector<8x8xf32>
    %54 = vector.broadcast %6 : vector<1x8xf32> to vector<8x8xf32>
    %55 = arith.addf %53, %54 : vector<8x8xf32>
    %cst_18 = arith.constant dense<0xFF800000> : vector<8xf32>
    %56 = vector.multi_reduction <maximumf>, %55, %cst_18 [1] : vector<8x8xf32> to vector<8xf32>
    %57 = vector.shape_cast %56 : vector<8xf32> to vector<8x1xf32>
    %58 = vector.broadcast %57 : vector<8x1xf32> to vector<8x8xf32>
    %59 = arith.subf %55, %58 : vector<8x8xf32>
    %60 = math.exp %59 : vector<8x8xf32>
    %cst_19 = arith.constant dense<0.000000e+00> : vector<8xf32>
    %61 = vector.multi_reduction <add>, %60, %cst_19 [1] : vector<8x8xf32> to vector<8xf32>
    %62 = vector.shape_cast %61 : vector<8xf32> to vector<8x1xf32>
    %63 = arith.truncf %60 : vector<8x8xf32> to vector<8x8xbf16>
    %64 = vector.extract_strided_slice %4 {offsets = [0, 16], sizes = [8, 8], strides = [1, 1]} : vector<8x32xbf16> to vector<8x8xbf16>
    %cst_20 = arith.constant dense<0.000000e+00> : vector<8x8xf32>
    %65 = tpu.matmul %63, %64, %cst_20 {dimension_numbers = #tpu.dot_dimension_numbers<[1], [0], [0], [1], [0, 0, 1, 1], [], []>} : vector<8x8xbf16>, vector<8x8xbf16>, vector<8x8xf32> -> vector<8x8xf32>
    %66 = tpu.reciprocal %62 {approx = true} : vector<8x1xf32> -> vector<8x1xf32>
    %67 = vector.broadcast %66 : vector<8x1xf32> to vector<8x8xf32>
    %68 = arith.mulf %65, %67 : vector<8x8xf32>
    %69 = arith.truncf %68 : vector<8x8xf32> to vector<8x8xbf16>
    %c0_21 = arith.constant 0 : index
    %c0_22 = arith.constant 0 : index
    %c16 = arith.constant 16 : index
    %70 = vector.load %arg3[%c0_21, %c0_22, %c16] : memref<1x8x32xbf16, #tpu.memory_space<vmem>>, vector<1x8x8xbf16>
    %71 = vector.shape_cast %70 : vector<1x8x8xbf16> to vector<8x8xbf16>
    %72 = vector.shape_cast %69 : vector<8x8xbf16> to vector<1x8x8xbf16>
    tpu.vector_store %arg3[%c0_21, %c0_22, %c16], %72 {strides = array<i32>} : memref<1x8x32xbf16, #tpu.memory_space<vmem>>, vector<1x8x8xbf16>,
    %73 = vector.extract_strided_slice %2 {offsets = [0, 24], sizes = [8, 8], strides = [1, 1]} : vector<8x32xbf16> to vector<8x8xbf16>
    %74 = vector.extract_strided_slice %3 {offsets = [0, 24], sizes = [8, 8], strides = [1, 1]} : vector<8x32xbf16> to vector<8x8xbf16>
    %cst_23 = arith.constant dense<0.000000e+00> : vector<8x8xf32>
    %75 = tpu.matmul %73, %74, %cst_23 {dimension_numbers = #tpu.dot_dimension_numbers<[1], [1], [0], [0], [0, 0, 1, 0], [], []>} : vector<8x8xbf16>, vector<8x8xbf16>, vector<8x8xf32> -> vector<8x8xf32>
    %76 = vector.broadcast %6 : vector<1x8xf32> to vector<8x8xf32>
    %77 = arith.addf %75, %76 : vector<8x8xf32>
    %cst_24 = arith.constant dense<0xFF800000> : vector<8xf32>
    %78 = vector.multi_reduction <maximumf>, %77, %cst_24 [1] : vector<8x8xf32> to vector<8xf32>
    %79 = vector.shape_cast %78 : vector<8xf32> to vector<8x1xf32>
    %80 = vector.broadcast %79 : vector<8x1xf32> to vector<8x8xf32>
    %81 = arith.subf %77, %80 : vector<8x8xf32>
    %82 = math.exp %81 : vector<8x8xf32>
    %cst_25 = arith.constant dense<0.000000e+00> : vector<8xf32>
    %83 = vector.multi_reduction <add>, %82, %cst_25 [1] : vector<8x8xf32> to vector<8xf32>
    %84 = vector.shape_cast %83 : vector<8xf32> to vector<8x1xf32>
    %85 = arith.truncf %82 : vector<8x8xf32> to vector<8x8xbf16>
    %86 = vector.extract_strided_slice %4 {offsets = [0, 24], sizes = [8, 8], strides = [1, 1]} : vector<8x32xbf16> to vector<8x8xbf16>
    %cst_26 = arith.constant dense<0.000000e+00> : vector<8x8xf32>
    %87 = tpu.matmul %85, %86, %cst_26 {dimension_numbers = #tpu.dot_dimension_numbers<[1], [0], [0], [1], [0, 0, 1, 1], [], []>} : vector<8x8xbf16>, vector<8x8xbf16>, vector<8x8xf32> -> vector<8x8xf32>
    %88 = tpu.reciprocal %84 {approx = true} : vector<8x1xf32> -> vector<8x1xf32>
    %89 = vector.broadcast %88 : vector<8x1xf32> to vector<8x8xf32>
    %90 = arith.mulf %87, %89 : vector<8x8xf32>
    %91 = arith.truncf %90 : vector<8x8xf32> to vector<8x8xbf16>
    %c0_27 = arith.constant 0 : index
    %c0_28 = arith.constant 0 : index
    %c24 = arith.constant 24 : index
    %92 = vector.load %arg3[%c0_27, %c0_28, %c24] : memref<1x8x32xbf16, #tpu.memory_space<vmem>>, vector<1x8x8xbf16>
    %93 = vector.shape_cast %92 : vector<1x8x8xbf16> to vector<8x8xbf16>
    %94 = vector.shape_cast %91 : vector<8x8xbf16> to vector<1x8x8xbf16>
    tpu.vector_store %arg3[%c0_27, %c0_28, %c24], %94 {strides = array<i32>} : memref<1x8x32xbf16, #tpu.memory_space<vmem>>, vector<1x8x8xbf16>,
    return
  }
  func.func @transform_0(%arg0: i32) -> (i32, i32, i32) {
    %c0_i32 = arith.constant 0 : i32
    %c0_i32_0 = arith.constant 0 : i32
    %c0_i32_1 = arith.constant 0 : i32
    return %arg0, %c0_i32, %c0_i32_0 : i32, i32, i32
  }
  func.func @transform_1(%arg0: i32) -> (i32, i32, i32) {
    %c0_i32 = arith.constant 0 : i32
    %c0_i32_0 = arith.constant 0 : i32
    %c0_i32_1 = arith.constant 0 : i32
    return %arg0, %c0_i32, %c0_i32_0 : i32, i32, i32
  }
  func.func @transform_2(%arg0: i32) -> (i32, i32, i32) {
    %c0_i32 = arith.constant 0 : i32
    %c0_i32_0 = arith.constant 0 : i32
    %c0_i32_1 = arith.constant 0 : i32
    return %arg0, %c0_i32, %c0_i32_0 : i32, i32, i32
  }
}

module attributes {stable_mosaic.version = 11 : i64} {
  func.func @_ffn_drn_kernel(%arg0: i32, %arg1: memref<16x32xf32, #tpu.memory_space<vmem>>, %arg2: memref<32x64xbf16, #tpu.memory_space<vmem>>, %arg3: memref<1x64xf32, #tpu.memory_space<vmem>>, %arg4: memref<64x32xbf16, #tpu.memory_space<vmem>>, %arg5: memref<1x32xf32, #tpu.memory_space<vmem>>, %arg6: memref<1x32xf32, #tpu.memory_space<vmem>>, %arg7: memref<1x32xf32, #tpu.memory_space<vmem>>, %arg8: memref<16x32xf32, #tpu.memory_space<vmem>>) attributes {dimension_semantics = [#tpu.dimension_semantics<parallel>], iteration_bounds = array<i64: 1>, scalar_prefetch = 0 : i64, scratch_operands = 0 : i64, tpu.core_type = #tpu.core_type<tc>, window_params = [{transform_indices = @transform_0, window_bounds = array<i64: 16, 32>}, {pipeline_mode = #tpu.pipeline_mode<synchronous>, transform_indices = @transform_1, window_bounds = array<i64: 32, 64>}, {pipeline_mode = #tpu.pipeline_mode<synchronous>, transform_indices = @transform_2, window_bounds = array<i64: 1, 64>}, {pipeline_mode = #tpu.pipeline_mode<synchronous>, transform_indices = @transform_3, window_bounds = array<i64: 64, 32>}, {pipeline_mode = #tpu.pipeline_mode<synchronous>, transform_indices = @transform_4, window_bounds = array<i64: 1, 32>}, {pipeline_mode = #tpu.pipeline_mode<synchronous>, transform_indices = @transform_5, window_bounds = array<i64: 1, 32>}, {pipeline_mode = #tpu.pipeline_mode<synchronous>, transform_indices = @transform_6, window_bounds = array<i64: 1, 32>}, {transform_indices = @transform_7, window_bounds = array<i64: 16, 32>}]} {
    %c0 = arith.constant 0 : index
    %c0_0 = arith.constant 0 : index
    %0 = vector.load %arg1[%c0, %c0_0] : memref<16x32xf32, #tpu.memory_space<vmem>>, vector<16x32xf32>
    %1 = arith.truncf %0 : vector<16x32xf32> to vector<16x32xbf16>
    %c0_1 = arith.constant 0 : index
    %c0_2 = arith.constant 0 : index
    %2 = vector.load %arg2[%c0_1, %c0_2] : memref<32x64xbf16, #tpu.memory_space<vmem>>, vector<32x64xbf16>
    %cst = arith.constant dense<0.000000e+00> : vector<16x64xf32>
    %3 = tpu.matmul %1, %2, %cst {dimension_numbers = #tpu.dot_dimension_numbers<[1], [0], [0], [1], [0, 0, 1, 1], [], []>} : vector<16x32xbf16>, vector<32x64xbf16>, vector<16x64xf32> -> vector<16x64xf32>
    %c0_3 = arith.constant 0 : index
    %c0_4 = arith.constant 0 : index
    %4 = vector.load %arg3[%c0_3, %c0_4] : memref<1x64xf32, #tpu.memory_space<vmem>>, vector<1x64xf32>
    %5 = vector.broadcast %4 : vector<1x64xf32> to vector<16x64xf32>
    %6 = arith.addf %3, %5 : vector<16x64xf32>
    %cst_5 = arith.constant 5.000000e-01 : f32
    %7 = vector.broadcast %cst_5 : f32 to vector<16x64xf32>
    %8 = arith.mulf %7, %6 : vector<16x64xf32>
    %cst_6 = arith.constant 4.471500e-02 : f32
    %9 = vector.broadcast %cst_6 : f32 to vector<16x64xf32>
    %10 = arith.mulf %9, %6 : vector<16x64xf32>
    %11 = arith.mulf %10, %6 : vector<16x64xf32>
    %12 = arith.mulf %11, %6 : vector<16x64xf32>
    %13 = arith.addf %6, %12 : vector<16x64xf32>
    %cst_7 = arith.constant 0.797884583 : f32
    %14 = vector.broadcast %cst_7 : f32 to vector<16x64xf32>
    %15 = arith.mulf %14, %13 : vector<16x64xf32>
    %16 = math.tanh %15 : vector<16x64xf32>
    %cst_8 = arith.constant 1.000000e+00 : f32
    %17 = vector.broadcast %cst_8 : f32 to vector<16x64xf32>
    %18 = arith.addf %17, %16 : vector<16x64xf32>
    %19 = arith.mulf %8, %18 : vector<16x64xf32>
    %20 = arith.truncf %19 : vector<16x64xf32> to vector<16x64xbf16>
    %c0_9 = arith.constant 0 : index
    %c0_10 = arith.constant 0 : index
    %21 = vector.load %arg4[%c0_9, %c0_10] : memref<64x32xbf16, #tpu.memory_space<vmem>>, vector<64x32xbf16>
    %cst_11 = arith.constant dense<0.000000e+00> : vector<16x32xf32>
    %22 = tpu.matmul %20, %21, %cst_11 {dimension_numbers = #tpu.dot_dimension_numbers<[1], [0], [0], [1], [0, 0, 1, 1], [], []>} : vector<16x64xbf16>, vector<64x32xbf16>, vector<16x32xf32> -> vector<16x32xf32>
    %c0_12 = arith.constant 0 : index
    %c0_13 = arith.constant 0 : index
    %23 = vector.load %arg5[%c0_12, %c0_13] : memref<1x32xf32, #tpu.memory_space<vmem>>, vector<1x32xf32>
    %24 = vector.broadcast %23 : vector<1x32xf32> to vector<16x32xf32>
    %25 = arith.addf %22, %24 : vector<16x32xf32>
    %26 = arith.addf %25, %0 : vector<16x32xf32>
    %c0_14 = arith.constant 0 : index
    %c0_15 = arith.constant 0 : index
    %27 = vector.load %arg6[%c0_14, %c0_15] : memref<1x32xf32, #tpu.memory_space<vmem>>, vector<1x32xf32>
    %c0_16 = arith.constant 0 : index
    %c0_17 = arith.constant 0 : index
    %28 = vector.load %arg7[%c0_16, %c0_17] : memref<1x32xf32, #tpu.memory_space<vmem>>, vector<1x32xf32>
    %cst_18 = arith.constant dense<0.000000e+00> : vector<16xf32>
    %29 = vector.multi_reduction <add>, %26, %cst_18 [1] : vector<16x32xf32> to vector<16xf32>
    %30 = vector.shape_cast %29 : vector<16xf32> to vector<16x1xf32>
    %cst_19 = arith.constant 3.200000e+01 : f32
    %31 = vector.broadcast %cst_19 : f32 to vector<16x1xf32>
    %32 = arith.divf %30, %31 : vector<16x1xf32>
    %33 = vector.broadcast %32 : vector<16x1xf32> to vector<16x32xf32>
    %34 = arith.subf %26, %33 : vector<16x32xf32>
    %35 = arith.mulf %34, %34 : vector<16x32xf32>
    %cst_20 = arith.constant dense<0.000000e+00> : vector<16xf32>
    %36 = vector.multi_reduction <add>, %35, %cst_20 [1] : vector<16x32xf32> to vector<16xf32>
    %37 = vector.shape_cast %36 : vector<16xf32> to vector<16x1xf32>
    %cst_21 = arith.constant 3.200000e+01 : f32
    %38 = vector.broadcast %cst_21 : f32 to vector<16x1xf32>
    %39 = arith.divf %37, %38 : vector<16x1xf32>
    %cst_22 = arith.constant 9.99999996E-13 : f32
    %40 = vector.broadcast %cst_22 : f32 to vector<16x1xf32>
    %41 = arith.addf %39, %40 : vector<16x1xf32>
    %42 = math.rsqrt %41 : vector<16x1xf32>
    %43 = vector.broadcast %42 : vector<16x1xf32> to vector<16x32xf32>
    %44 = arith.mulf %34, %43 : vector<16x32xf32>
    %45 = vector.broadcast %27 : vector<1x32xf32> to vector<16x32xf32>
    %46 = arith.mulf %44, %45 : vector<16x32xf32>
    %47 = vector.broadcast %28 : vector<1x32xf32> to vector<16x32xf32>
    %48 = arith.addf %46, %47 : vector<16x32xf32>
    %c0_23 = arith.constant 0 : index
    %c0_24 = arith.constant 0 : index
    %49 = vector.load %arg8[%c0_23, %c0_24] : memref<16x32xf32, #tpu.memory_space<vmem>>, vector<16x32xf32>
    tpu.vector_store %arg8[%c0_23, %c0_24], %48 {strides = array<i32>} : memref<16x32xf32, #tpu.memory_space<vmem>>, vector<16x32xf32>,
    return
  }
  func.func @transform_0(%arg0: i32) -> (i32, i32) {
    %c0_i32 = arith.constant 0 : i32
    %c0_i32_0 = arith.constant 0 : i32
    return %arg0, %c0_i32 : i32, i32
  }
  func.func @transform_1(%arg0: i32) -> (i32, i32) {
    %c0_i32 = arith.constant 0 : i32
    %c0_i32_0 = arith.constant 0 : i32
    %c0_i32_1 = arith.constant 0 : i32
    return %c0_i32, %c0_i32_0 : i32, i32
  }
  func.func @transform_2(%arg0: i32) -> (i32, i32) {
    %c0_i32 = arith.constant 0 : i32
    %c0_i32_0 = arith.constant 0 : i32
    %c0_i32_1 = arith.constant 0 : i32
    return %c0_i32, %c0_i32_0 : i32, i32
  }
  func.func @transform_3(%arg0: i32) -> (i32, i32) {
    %c0_i32 = arith.constant 0 : i32
    %c0_i32_0 = arith.constant 0 : i32
    %c0_i32_1 = arith.constant 0 : i32
    return %c0_i32, %c0_i32_0 : i32, i32
  }
  func.func @transform_4(%arg0: i32) -> (i32, i32) {
    %c0_i32 = arith.constant 0 : i32
    %c0_i32_0 = arith.constant 0 : i32
    %c0_i32_1 = arith.constant 0 : i32
    return %c0_i32, %c0_i32_0 : i32, i32
  }
  func.func @transform_5(%arg0: i32) -> (i32, i32) {
    %c0_i32 = arith.constant 0 : i32
    %c0_i32_0 = arith.constant 0 : i32
    %c0_i32_1 = arith.constant 0 : i32
    return %c0_i32, %c0_i32_0 : i32, i32
  }
  func.func @transform_6(%arg0: i32) -> (i32, i32) {
    %c0_i32 = arith.constant 0 : i32
    %c0_i32_0 = arith.constant 0 : i32
    %c0_i32_1 = arith.constant 0 : i32
    return %c0_i32, %c0_i32_0 : i32, i32
  }
  func.func @transform_7(%arg0: i32) -> (i32, i32) {
    %c0_i32 = arith.constant 0 : i32
    %c0_i32_0 = arith.constant 0 : i32
    return %arg0, %c0_i32 : i32, i32
  }
}

</mosaic_0001>

<llo_original>
// kernel: _forward_impl.4
$region0: #{_forward_impl.4}
  #allocation0 [shape = 'u32[]', space=smem, size = 0x4, offset = 0x4, fixed_abs, tag = 'smem constant byte address 0x4 - core index']
  #allocation1 [shape = 'u32[72,128]{1,0:T(1,128)}', space=vmem, size = 0x9000, scoped, tag = 'internal scratch']
  %s0 = inlined_call_operand.hbm [shape: f32[16,32], index: 0, kind: input, shape index: {}]
  %s1 = inlined_call_operand.hbm [shape: bf16[32,96], index: 1, kind: input, shape index: {}]
  %s2 = inlined_call_operand.hbm [shape: f32[1,96], index: 2, kind: input, shape index: {}]
  %s3 = inlined_call_operand.vmem [shape: bf16[16,96], index: 3, kind: output, shape index: {}]
  %s4 = sld [smem:[#allocation0]]
  $region34: #{_forward_impl.4} parent=0
    _
  %s6 = ssub.s32 1, %s4
  %s7 = scalar_select 0, %s6, %s4
  $region1: #{_forward_impl.4} parent=0
    #allocation2 [shape = 'u8[8192]{0}', space=vmem, size = 0x2000, scoped, tag = 'input window, operand 0, single buffered']
    #allocation3 [shape = 's32[1]{0}', space=sflag, size = 0x4, scoped, tag = 'scoped memory for _forward_impl.4']
    #allocation4 [shape = 'u8[8192]{0}', space=vmem, size = 0x2000, scoped, tag = 'input window, operand 1, single buffered']
    #allocation5 [shape = 's32[1]{0}', space=sflag, size = 0x4, scoped, tag = 'scoped memory for _forward_impl.4']
    #allocation6 [shape = 'u8[512]{0}', space=vmem, size = 0x400, scoped, tag = 'input window, operand 2, single buffered']
    %8 = vsyncpa [#allocation3], 0
    %9 = vsyncpa [#allocation5], 0
    // Predicated region
    $region2: #{_forward_impl.4} parent=1 // pred_check
      _
    $region3: #{_forward_impl.4} parent=1 // pred_check_branch
      %11 = sbr.rel (0) target = $region5
    $region4: #{_forward_impl.4} parent=1 // pred_region
      %13 = vsyncadd [#allocation3], 0
      %s14 = sshll.u32 %s0, 4
      %s15 = int_to_ptr.hbm [resolvable:$true] %s14
      %s16 = sshll.u32 [#allocation2], 4
      %s17 = int_to_ptr.vmem [resolvable:$true] %s16
      %22 = dma.hbm_to_vmem [thread:$0]  %s15, 256, %s17, [#allocation3], 128, 128, 8
    $region5: #{_forward_impl.4} parent=1 // pred_fallthru
      _
    // Predicated region
    $region6: #{_forward_impl.4} parent=1 // pred_check
      _
    $region7: #{_forward_impl.4} parent=1 // pred_check_branch
      %24 = sbr.rel (0) target = $region9
    $region8: #{_forward_impl.4} parent=1 // pred_region
      %26 = vsyncadd [#allocation5], 0
      %s27 = sshll.u32 %s1, 4
      %s28 = int_to_ptr.hbm [resolvable:$true] %s27
      %s29 = sshll.u32 [#allocation4], 4
      %s30 = int_to_ptr.vmem [resolvable:$true] %s29
      %35 = dma.hbm_to_vmem [thread:$0]  %s28, 256, %s30, [#allocation5], 64, 64, 4
    $region9: #{_forward_impl.4} parent=1 // pred_fallthru
      _
    // Predicated region
    $region10: #{_forward_impl.4} parent=1 // pred_check
      _
    $region11: #{_forward_impl.4} parent=1 // pred_check_branch
      %37 = sbr.rel (0) target = $region13
    $region12: #{_forward_impl.4} parent=1 // pred_region
      %39 = vsyncadd [#allocation5], 0
      %s41 = sshll.u32 %s2, 4
      %s42 = int_to_ptr.hbm [resolvable:$true] %s41
      %s43 = sshll.u32 [#allocation6], 4
      %s44 = int_to_ptr.vmem [resolvable:$true] %s43
      %46 = dma.hbm_to_vmem [thread:$0]  %s42, 16, %s44, [#allocation5]
    $region13: #{_forward_impl.4} parent=1 // pred_fallthru
      _
    // Predicated region
    $region14: #{_forward_impl.4} parent=1 // pred_check
      _
    $region15: #{_forward_impl.4} parent=1 // pred_check_branch
      %48 = sbr.rel (0) target = $region17
    $region16: #{_forward_impl.4} parent=1 // pred_region
      %50 = dma.done [#allocation3], 256
    $region17: #{_forward_impl.4} parent=1 // pred_fallthru
      _
    // Predicated region
    $region18: #{_forward_impl.4} parent=1 // pred_check
      _
    $region19: #{_forward_impl.4} parent=1 // pred_check_branch
      %52 = sbr.rel (0) target = $region21
    $region20: #{_forward_impl.4} parent=1 // pred_region
      %54 = dma.done [#allocation5], 256
    $region21: #{_forward_impl.4} parent=1 // pred_fallthru
      _
    // Predicated region
    $region22: #{_forward_impl.4} parent=1 // pred_check
      _
    $region23: #{_forward_impl.4} parent=1 // pred_check_branch
      %56 = sbr.rel (0) target = $region25
    $region24: #{_forward_impl.4} parent=1 // pred_region
      %58 = dma.done [#allocation5], 16
    $region25: #{_forward_impl.4} parent=1 // pred_fallthru
      _
    %v60 = vld [vmem:[#allocation2] sm:$0xff]
    %v61 = vld [vmem:[#allocation2 + $0x8] sm:$0xff]
    %v62 = vpack.c.bf16 %v61, %v60
    %v63 = vld [vmem:[#allocation4] sm:$0xf]
    %v64 = vld [vmem:[#allocation4 + $0x4] sm:$0xf]
    %v65 = vld [vmem:[#allocation4 + $0x8] sm:$0xf]
    %v66 = vld [vmem:[#allocation4 + $0xc] sm:$0xf]
    %v67 = vld [vmem:[#allocation6] sm:$0x1]
    %v69 = vperm.slane %v67, 0
    %v75 = vunpack.c.l.b16 %v63
    %v76 = vunpack.c.l.b16 %v64
    %v77 = vunpack.c.l.b16 %v65
    %v78 = vunpack.c.l.b16 %v66
    %v79 = vpack.c.b16 %v76, %v75
    %v80 = vpack.c.b16 %v78, %v77
    %vm83 = vcmask 261120
    %v85 = vsel %vm83, %v62, 0
    %87 = vmatpush.bf16.msra.mxu0 0
    %88 = vmatpush.bf16.msra.mxu0 0
    %89 = vmatpush.bf16.msra.mxu0 0
    %90 = vmatpush.bf16.msra.mxu0 0
    %91 = vmatpush.bf16.msra.mxu0 0
    %92 = vmatpush.bf16.msra.mxu0 0
    %93 = vmatpush.bf16.msra.mxu0 %v80
    %94 = vmatpush.bf16.msra.mxu0 %v79
    %95 = vmatmul.bf16.gmra.mxu0 %v85
    %v96 = vpop.f32.mrf.mxu0
    %v97 = vadd.f32 %v69, %v96
    %v98 = vpop.f32.mrf.mxu0
    %v99 = vadd.f32 %v69, %v98
    %100 = vdwg.mxu0
    %v101 = vpack.c.bf16 %v97, %v97
    %v102 = vpack.c.bf16 %v99, %v99
    %vm103 = vcmask 781312
    %104 = vst.msk [vmem:[%s3] sm:$0xf] %vm103, %v101
    %105 = vst.msk [vmem:[%s3 + $0x4] sm:$0xf] %vm103, %v102
    // Predicated region
    $region26: #{_forward_impl.4} parent=1 // pred_check
      _
    $region27: #{_forward_impl.4} parent=1 // pred_check_branch
      %107 = sbr.rel (0) target = $region29
    $region28: #{_forward_impl.4} parent=1 // pred_region
      _
    $region29: #{_forward_impl.4} parent=1 // pred_fallthru
      _
    // Predicated region
    $region30: #{_forward_impl.4} parent=1 // pred_check
      _
    $region31: #{_forward_impl.4} parent=1 // pred_check_branch
      %109 = sbr.rel (0) target = $region33
    $region32: #{_forward_impl.4} parent=1 // pred_region
      _
    $region33: #{_forward_impl.4} parent=1 // pred_fallthru
      _
    %110 = vsyncpa [#allocation3], 1
    %111 = vsyncpa [#allocation5], 1

// kernel: _forward_impl.6
$region0: #{_forward_impl.6}
  #allocation0 [shape = 'u32[]', space=smem, size = 0x4, offset = 0x4, fixed_abs, tag = 'smem constant byte address 0x4 - core index']
  #allocation1 [shape = 'u32[72,128]{1,0:T(1,128)}', space=vmem, size = 0x9000, scoped, tag = 'internal scratch']
  %s0 = inlined_call_operand.vmem [shape: bf16[16,32], index: 0, kind: input, shape index: {}]
  %s1 = inlined_call_operand.hbm [shape: f32[16,32], index: 1, kind: input, shape index: {}]
  %s2 = inlined_call_operand.hbm [shape: bf16[32,32], index: 2, kind: input, shape index: {}]
  %s3 = inlined_call_operand.hbm [shape: f32[1,32], index: 3, kind: input, shape index: {}]
  %s4 = inlined_call_operand.hbm [shape: f32[1,32], index: 4, kind: input, shape index: {}]
  %s5 = inlined_call_operand.hbm [shape: f32[1,32], index: 5, kind: input, shape index: {}]
  %s6 = inlined_call_operand.vmem [shape: f32[16,32], index: 6, kind: output, shape index: {}]
  %s7 = sld [smem:[#allocation0]]
  $region54: #{_forward_impl.6} parent=0
    _
  %s9 = ssub.s32 1, %s7
  %s10 = scalar_select 0, %s9, %s7
  $region1: #{_forward_impl.6} parent=0
    #allocation2 [shape = 'u8[8192]{0}', space=vmem, size = 0x2000, scoped, tag = 'input window, operand 1, single buffered']
    #allocation3 [shape = 's32[1]{0}', space=sflag, size = 0x4, scoped, tag = 'scoped memory for _forward_impl.6']
    #allocation4 [shape = 'u8[8192]{0}', space=vmem, size = 0x2000, scoped, tag = 'input window, operand 2, single buffered']
    #allocation5 [shape = 's32[1]{0}', space=sflag, size = 0x4, scoped, tag = 'scoped memory for _forward_impl.6']
    #allocation6 [shape = 'u8[512]{0}', space=vmem, size = 0x400, scoped, tag = 'input window, operand 3, single buffered']
    #allocation7 [shape = 'u8[512]{0}', space=vmem, size = 0x400, scoped, tag = 'input window, operand 4, single buffered']
    #allocation8 [shape = 's32[1]{0}', space=sflag, size = 0x4, scoped, tag = 'scoped memory for _forward_impl.6']
    #allocation9 [shape = 'u8[512]{0}', space=vmem, size = 0x400, scoped, tag = 'input window, operand 5, single buffered']
    %11 = vsyncpa [#allocation3], 0
    %12 = vsyncpa [#allocation5], 0
    %13 = vsyncpa [#allocation8], 0
    // Predicated region
    $region2: #{_forward_impl.6} parent=1 // pred_check
      _
    $region3: #{_forward_impl.6} parent=1 // pred_check_branch
      %15 = sbr.rel (0) target = $region5
    $region4: #{_forward_impl.6} parent=1 // pred_region
      _
    $region5: #{_forward_impl.6} parent=1 // pred_fallthru
      _
    // Predicated region
    $region6: #{_forward_impl.6} parent=1 // pred_check
      _
    $region7: #{_forward_impl.6} parent=1 // pred_check_branch
      %17 = sbr.rel (0) target = $region9
    $region8: #{_forward_impl.6} parent=1 // pred_region
      %19 = vsyncadd [#allocation3], 0
      %s20 = sshll.u32 %s1, 4
      %s21 = int_to_ptr.hbm [resolvable:$true] %s20
      %s22 = sshll.u32 [#allocation2], 4
      %s23 = int_to_ptr.vmem [resolvable:$true] %s22
      %28 = dma.hbm_to_vmem [thread:$0]  %s21, 256, %s23, [#allocation3], 128, 128, 8
    $region9: #{_forward_impl.6} parent=1 // pred_fallthru
      _
    // Predicated region
    $region10: #{_forward_impl.6} parent=1 // pred_check
      _
    $region11: #{_forward_impl.6} parent=1 // pred_check_branch
      %30 = sbr.rel (0) target = $region13
    $region12: #{_forward_impl.6} parent=1 // pred_region
      %32 = vsyncadd [#allocation5], 0
      %s33 = sshll.u32 %s2, 4
      %s34 = int_to_ptr.hbm [resolvable:$true] %s33
      %s35 = sshll.u32 [#allocation4], 4
      %s36 = int_to_ptr.vmem [resolvable:$true] %s35
      %41 = dma.hbm_to_vmem [thread:$0]  %s34, 256, %s36, [#allocation5], 64, 64, 4
    $region13: #{_forward_impl.6} parent=1 // pred_fallthru
      _
    // Predicated region
    $region14: #{_forward_impl.6} parent=1 // pred_check
      _
    $region15: #{_forward_impl.6} parent=1 // pred_check_branch
      %43 = sbr.rel (0) target = $region17
    $region16: #{_forward_impl.6} parent=1 // pred_region
      %45 = vsyncadd [#allocation5], 0
      %s47 = sshll.u32 %s3, 4
      %s48 = int_to_ptr.hbm [resolvable:$true] %s47
      %s49 = sshll.u32 [#allocation6], 4
      %s50 = int_to_ptr.vmem [resolvable:$true] %s49
      %52 = dma.hbm_to_vmem [thread:$0]  %s48, 16, %s50, [#allocation5]
    $region17: #{_forward_impl.6} parent=1 // pred_fallthru
      _
    // Predicated region
    $region18: #{_forward_impl.6} parent=1 // pred_check
      _
    $region19: #{_forward_impl.6} parent=1 // pred_check_branch
      %54 = sbr.rel (0) target = $region21
    $region20: #{_forward_impl.6} parent=1 // pred_region
      %56 = vsyncadd [#allocation8], 0
      %s58 = sshll.u32 %s4, 4
      %s59 = int_to_ptr.hbm [resolvable:$true] %s58
      %s60 = sshll.u32 [#allocation7], 4
      %s61 = int_to_ptr.vmem [resolvable:$true] %s60
      %63 = dma.hbm_to_vmem [thread:$0]  %s59, 16, %s61, [#allocation8]
    $region21: #{_forward_impl.6} parent=1 // pred_fallthru
      _
    // Predicated region
    $region22: #{_forward_impl.6} parent=1 // pred_check
      _
    $region23: #{_forward_impl.6} parent=1 // pred_check_branch
      %65 = sbr.rel (0) target = $region25
    $region24: #{_forward_impl.6} parent=1 // pred_region
      %67 = vsyncadd [#allocation8], 0
      %s69 = sshll.u32 %s5, 4
      %s70 = int_to_ptr.hbm [resolvable:$true] %s69
      %s71 = sshll.u32 [#allocation9], 4
      %s72 = int_to_ptr.vmem [resolvable:$true] %s71
      %74 = dma.hbm_to_vmem [thread:$0]  %s70, 16, %s72, [#allocation8]
    $region25: #{_forward_impl.6} parent=1 // pred_fallthru
      _
    // Predicated region
    $region26: #{_forward_impl.6} parent=1 // pred_check
      _
    $region27: #{_forward_impl.6} parent=1 // pred_check_branch
      %76 = sbr.rel (0) target = $region29
    $region28: #{_forward_impl.6} parent=1 // pred_region
      %78 = dma.done [#allocation3], 256
    $region29: #{_forward_impl.6} parent=1 // pred_fallthru
      _
    // Predicated region
    $region30: #{_forward_impl.6} parent=1 // pred_check
      _
    $region31: #{_forward_impl.6} parent=1 // pred_check_branch
      %80 = sbr.rel (0) target = $region33
    $region32: #{_forward_impl.6} parent=1 // pred_region
      %82 = dma.done [#allocation5], 256
    $region33: #{_forward_impl.6} parent=1 // pred_fallthru
      _
    // Predicated region
    $region34: #{_forward_impl.6} parent=1 // pred_check
      _
    $region35: #{_forward_impl.6} parent=1 // pred_check_branch
      %84 = sbr.rel (0) target = $region37
    $region36: #{_forward_impl.6} parent=1 // pred_region
      %86 = dma.done [#allocation5], 16
    $region37: #{_forward_impl.6} parent=1 // pred_fallthru
      _
    // Predicated region
    $region38: #{_forward_impl.6} parent=1 // pred_check
      _
    $region39: #{_forward_impl.6} parent=1 // pred_check_branch
      %88 = sbr.rel (0) target = $region41
    $region40: #{_forward_impl.6} parent=1 // pred_region
      %90 = dma.done [#allocation8], 16
    $region41: #{_forward_impl.6} parent=1 // pred_fallthru
      _
    // Predicated region
    $region42: #{_forward_impl.6} parent=1 // pred_check
      _
    $region43: #{_forward_impl.6} parent=1 // pred_check_branch
      %92 = sbr.rel (0) target = $region45
    $region44: #{_forward_impl.6} parent=1 // pred_region
      %94 = dma.done [#allocation8], 16
    $region45: #{_forward_impl.6} parent=1 // pred_fallthru
      _
    %v96 = vld [vmem:[%s0] sm:$0xf]
    %v97 = vld [vmem:[%s0 + $0x4] sm:$0xf]
    %v98 = vld [vmem:[#allocation4] sm:$0xf]
    %v99 = vld [vmem:[#allocation4 + $0x4] sm:$0xf]
    %v100 = vld [vmem:[#allocation4 + $0x8] sm:$0xf]
    %v101 = vld [vmem:[#allocation4 + $0xc] sm:$0xf]
    %v102 = vld [vmem:[#allocation6] sm:$0x1]
    %v104 = vperm.slane %v102, 0
    %v108 = vunpack.c.l.b16 %v96
    %v109 = vunpack.c.l.b16 %v97
    %v110 = vpack.c.b16 %v109, %v108
    %v115 = vunpack.c.l.b16 %v98
    %v116 = vunpack.c.l.b16 %v99
    %v117 = vunpack.c.l.b16 %v100
    %v118 = vunpack.c.l.b16 %v101
    %v119 = vpack.c.b16 %v116, %v115
    %v120 = vpack.c.b16 %v118, %v117
    %vm123 = vcmask 261120
    %v125 = vsel %vm123, %v110, 0
    %127 = vmatpush.bf16.msra.mxu0 0
    %128 = vmatpush.bf16.msra.mxu0 0
    %129 = vmatpush.bf16.msra.mxu0 0
    %130 = vmatpush.bf16.msra.mxu0 0
    %131 = vmatpush.bf16.msra.mxu0 0
    %132 = vmatpush.bf16.msra.mxu0 0
    %133 = vmatpush.bf16.msra.mxu0 %v120
    %134 = vmatpush.bf16.msra.mxu0 %v119
    %135 = vmatmul.bf16.gmra.mxu0 %v125
    %v136 = vpop.f32.mrf.mxu0
    %v137 = vadd.f32 %v104, %v136
    %v138 = vpop.f32.mrf.mxu0
    %v139 = vadd.f32 %v104, %v138
    %140 = vdwg.mxu0
    %v141 = vld [vmem:[#allocation2] sm:$0xff]
    %v142 = vld [vmem:[#allocation2 + $0x8] sm:$0xff]
    %v143 = vadd.f32 %v137, %v141
    %v144 = vadd.f32 %v139, %v142
    %v145 = vld [vmem:[#allocation7] sm:$0x1]
    %v146 = vld [vmem:[#allocation9] sm:$0x1]
    %v147 = vsel %vm123, %v143, 0.0
    %148 = vadd.xlane.f32.xlu0 %v147
    %v149 = vpop.xlane.xlu0 %148
    %v150 = vsel %vm123, %v144, 0.0
    %151 = vadd.xlane.f32.xlu0 %v150
    %v152 = vpop.xlane.xlu0 %151
    %v153 = vrcp.pop 32.0
    %v154 = vmul.f32 32.0, %v153
    %v155 = vsub.f32 1.0, %v154
    %v156 = vmul.f32 %v153, %v155
    %v157 = vadd.f32 %v153, %v156
    %vm158 = vweird.f32 %v153
    %v159 = vsel %vm158, %v153, %v157
    %v160 = vmul.f32 %v149, %v159
    %v161 = vmul.f32 %v152, %v159
    %v162 = vsub.f32 %v143, %v160
    %v163 = vsub.f32 %v144, %v161
    %v164 = vmul.f32 %v162, %v162
    %v165 = vmul.f32 %v163, %v163
    %v166 = vsel %vm123, %v164, 0.0
    %167 = vadd.xlane.f32.xlu0 %v166
    %v168 = vpop.xlane.xlu0 %167
    %v169 = vsel %vm123, %v165, 0.0
    %170 = vadd.xlane.f32.xlu0 %v169
    %v171 = vpop.xlane.xlu0 %170
    %v172 = vmul.f32 %v168, %v159
    %v173 = vmul.f32 %v171, %v159
    %v174 = vadd.f32 %v172, 1e-12
    %v175 = vadd.f32 %v173, 1e-12
    %v176 = vrsqrt.pop %v174
    %v177 = vmul.f32 %v176, %v174
    %v178 = vmul.f32 %v177, %v176
    %v179 = vmul.f32 0.5, %v178
    %v180 = vsub.f32 1.5, %v179
    %v181 = vmul.f32 %v176, %v180
    %vm182 = vweird.f32 %v174
    %vm183 = vweird.f32 %v176
    %vm184 = vmor %vm182, %vm183
    %v185 = vsel %vm184, %v176, %v181
    %v186 = vrsqrt.pop %v175
    %v187 = vmul.f32 %v186, %v175
    %v188 = vmul.f32 %v187, %v186
    %v189 = vmul.f32 0.5, %v188
    %v190 = vsub.f32 1.5, %v189
    %v191 = vmul.f32 %v186, %v190
    %vm192 = vweird.f32 %v175
    %vm193 = vweird.f32 %v186
    %vm194 = vmor %vm192, %vm193
    %v195 = vsel %vm194, %v186, %v191
    %v196 = vmul.f32 %v162, %v185
    %v197 = vmul.f32 %v163, %v195
    %v199 = vperm.slane %v145, 0
    %v201 = vmul.f32 %v196, %v199
    %v202 = vmul.f32 %v197, %v199
    %v204 = vperm.slane %v146, 0
    %v206 = vadd.f32 %v201, %v204
    %v207 = vadd.f32 %v202, %v204
    %208 = vst.msk [vmem:[%s6] sm:$0xff] %vm123, %v206
    %209 = vst.msk [vmem:[%s6 + $0x8] sm:$0xff] %vm123, %v207
    // Predicated region
    $region46: #{_forward_impl.6} parent=1 // pred_check
      _
    $region47: #{_forward_impl.6} parent=1 // pred_check_branch
      %211 = sbr.rel (0) target = $region49
    $region48: #{_forward_impl.6} parent=1 // pred_region
      _
    $region49: #{_forward_impl.6} parent=1 // pred_fallthru
      _
    // Predicated region
    $region50: #{_forward_impl.6} parent=1 // pred_check
      _
    $region51: #{_forward_impl.6} parent=1 // pred_check_branch
      %213 = sbr.rel (0) target = $region53
    $region52: #{_forward_impl.6} parent=1 // pred_region
      _
    $region53: #{_forward_impl.6} parent=1 // pred_fallthru
      _
    %214 = vsyncpa [#allocation3], 1
    %215 = vsyncpa [#allocation5], 1
    %216 = vsyncpa [#allocation8], 1

// kernel: _forward_impl.5
$region0: #{_forward_impl.5}
  #allocation0 [shape = 'u32[]', space=smem, size = 0x4, offset = 0x4, fixed_abs, tag = 'smem constant byte address 0x4 - core index']
  #allocation1 [shape = 'u32[72,128]{1,0:T(1,128)}', space=vmem, size = 0x9000, scoped, tag = 'internal scratch']
  %s0 = inlined_call_operand.vmem [shape: bf16[2,8,96], index: 0, kind: input, shape index: {}]
  %s1 = inlined_call_operand.vmem [shape: f32[2,1,8], index: 1, kind: input, shape index: {}]
  %s2 = inlined_call_operand.vmem [shape: bf16[2,8,32], index: 2, kind: output, shape index: {}]
  %s3 = sld [smem:[#allocation0]]
  $region41: #{_forward_impl.5} parent=0
    _
  %s5 = ssub.s32 1, %s3
  %s6 = scalar_select 0, %s5, %s3
  loop: start=0, step=1, limit=4
  $region2: #{_forward_impl.5} parent=0 // loop_pre_header
    _
  $region3: #{_forward_impl.5} parent=0 // loop_header
    %s8 = sphi 0, %s12
    %p9 = scmp.ge.s32.totalorder %s8, 4
    %s18 = sphi 0, %s20
    %s21 = sphi 0, %s18
    %s22 = sphi 0, %s21
    %s38 = sphi 0, %s22
    %s44 = sphi 0, %s46
    %s47 = sphi 0, %s44
    %s48 = sphi 0, %s47
    %s64 = sphi 0, %s48
    %s70 = sphi 0, %s72
    %s73 = sphi 0, %s70
    %s74 = sphi 0, %s73
    %s90 = sphi 0, %s74
  $region4: #{_forward_impl.5} parent=0 // loop_header_branch
    %11 = sbr.rel (%p9) target = $region8
  $region5: #{_forward_impl.5} parent=0 // loop_body
    %s13 = ssub.s32 %s8, 1
    %s14 = ssub.s32 %s8, 2
    %s15 = sadd.s32 %s8, 1
    %s16 = ssub.s32 %s8, %s15
    %p17 = scmp.eq.s32.totalorder %s16, 0
    %s19 = sadd.s32 %s18, 1
    %s20 = scalar_select %p17, %s18, %s19
    %p23 = pneg %p17
    %p24 = scmp.eq.s32.totalorder %s8, 1
    %p25 = por %p23, %p24
    %p26 = scmp.ne.s32.totalorder %s18, %s21
    %p27 = scmp.eq.s32.totalorder %s8, 0
    %p28 = por %p26, %p27
    %p29 = scmp.ne.s32.totalorder %s18, %s21
    %p30 = scmp.eq.s32.totalorder %s13, 1
    %p31 = por %p29, %p30
    %p32 = scmp.ne.s32.totalorder %s21, %s22
    %p33 = scmp.eq.s32.totalorder %s13, 0
    %p34 = por %p32, %p33
    %p35 = scmp.ne.s32.totalorder %s21, %s22
    %p36 = scmp.eq.s32.totalorder %s14, 1
    %p37 = por %p35, %p36
    %p39 = scmp.ne.s32.totalorder %s22, %s38
    %p40 = scmp.eq.s32.totalorder %s14, 0
    %p41 = por %p39, %p40
    %s42 = ssub.s32 %s8, %s15
    %p43 = scmp.eq.s32.totalorder %s42, 0
    %s45 = sadd.s32 %s44, 1
    %s46 = scalar_select %p43, %s44, %s45
    %p49 = pneg %p43
    %p50 = scmp.eq.s32.totalorder %s8, 1
    %p51 = por %p49, %p50
    %p52 = scmp.ne.s32.totalorder %s44, %s47
    %p53 = scmp.eq.s32.totalorder %s8, 0
    %p54 = por %p52, %p53
    %p55 = scmp.ne.s32.totalorder %s44, %s47
    %p56 = scmp.eq.s32.totalorder %s13, 1
    %p57 = por %p55, %p56
    %p58 = scmp.ne.s32.totalorder %s47, %s48
    %p59 = scmp.eq.s32.totalorder %s13, 0
    %p60 = por %p58, %p59
    %p61 = scmp.ne.s32.totalorder %s47, %s48
    %p62 = scmp.eq.s32.totalorder %s14, 1
    %p63 = por %p61, %p62
    %p65 = scmp.ne.s32.totalorder %s48, %s64
    %p66 = scmp.eq.s32.totalorder %s14, 0
    %p67 = por %p65, %p66
    %s68 = ssub.s32 %s8, %s15
    %p69 = scmp.eq.s32.totalorder %s68, 0
    %s71 = sadd.s32 %s70, 1
    %s72 = scalar_select %p69, %s70, %s71
    %p75 = pneg %p69
    %p76 = scmp.eq.s32.totalorder %s8, 1
    %p77 = por %p75, %p76
    %p78 = scmp.ne.s32.totalorder %s70, %s73
    %p79 = scmp.eq.s32.totalorder %s8, 0
    %p80 = por %p78, %p79
    %p81 = scmp.ne.s32.totalorder %s70, %s73
    %p82 = scmp.eq.s32.totalorder %s13, 1
    %p83 = por %p81, %p82
    %p84 = scmp.ne.s32.totalorder %s73, %s74
    %p85 = scmp.eq.s32.totalorder %s13, 0
    %p86 = por %p84, %p85
    %p87 = scmp.ne.s32.totalorder %s73, %s74
    %p88 = scmp.eq.s32.totalorder %s14, 1
    %p89 = por %p87, %p88
    %p91 = scmp.ne.s32.totalorder %s74, %s90
    %p92 = scmp.eq.s32.totalorder %s14, 0
    %p93 = por %p91, %p92
    %p94 = scmp.le.s32.totalorder 1, %s8
    %p95 = scmp.lt.s32.totalorder %s8, 3
    %p96 = pnand %p94, %p95
    %p97 = pneg %p96
    // Predicated region
    $region9: #{_forward_impl.5} parent=5 // pred_check
      _
    $region10: #{_forward_impl.5} parent=5 // pred_check_branch
      %99 = sbr.rel (%p96) target = $region12
    $region11: #{_forward_impl.5} parent=5 // pred_region
      %s100 = ssub.s32 %s8, 1
    $region12: #{_forward_impl.5} parent=5 // pred_fallthru
      _
    %p101 = scmp.lt.s32.totalorder %s8, 2
    // Predicated region
    $region13: #{_forward_impl.5} parent=5 // pred_check
      %p102 = pneg %p101
    $region14: #{_forward_impl.5} parent=5 // pred_check_branch
      %104 = sbr.rel (%p102) target = $region16
    $region15: #{_forward_impl.5} parent=5 // pred_region
      // Predicated region
      $region17: #{_forward_impl.5} parent=15 // pred_check
        %p105 = pneg %p28
      $region18: #{_forward_impl.5} parent=15 // pred_check_branch
        %107 = sbr.rel (%p105) target = $region20
      $region19: #{_forward_impl.5} parent=15 // pred_region
        %p108 = scmp.lt.s32.totalorder %s8, 1
        %s109 = scalar_select %p108, %s8, 1
        %s110 = smul.addr %s109, 4
        %s111 = scalar_lea.vmem %s0, %s110
      $region20: #{_forward_impl.5} parent=15 // pred_fallthru
        _
      // Predicated region
      $region21: #{_forward_impl.5} parent=15 // pred_check
        %p112 = pneg %p54
      $region22: #{_forward_impl.5} parent=15 // pred_check_branch
        %114 = sbr.rel (%p112) target = $region24
      $region23: #{_forward_impl.5} parent=15 // pred_region
        %p115 = scmp.lt.s32.totalorder %s8, 1
        %s116 = scalar_select %p115, %s8, 1
        %s117 = scalar_lea.vmem %s1, %s116
      $region24: #{_forward_impl.5} parent=15 // pred_fallthru
        _
    $region16: #{_forward_impl.5} parent=5 // pred_fallthru
      _
    %p118 = scmp.le.s32.totalorder 1, %s8
    %p119 = scmp.lt.s32.totalorder %s8, 3
    %p120 = pnand %p118, %p119
    %p121 = pneg %p120
    // Predicated region
    $region25: #{_forward_impl.5} parent=5 // pred_check
      _
    $region26: #{_forward_impl.5} parent=5 // pred_check_branch
      %123 = sbr.rel (%p120) target = $region28
    $region27: #{_forward_impl.5} parent=5 // pred_region
      %s124 = ssub.s32 %s8, 1
      %p125 = scmp.lt.s32.totalorder %s13, 1
      %s126 = scalar_select %p125, %s13, 1
      %s127 = smul.addr %s126, 4
      %s128 = scalar_lea.vmem %s0, %s127
      %p129 = pneg %p34
      %p130 = pneg %p31
      %p131 = scmp.lt.s32.totalorder %s13, 1
      %s132 = scalar_select %p131, %s13, 1
      %s133 = scalar_lea.vmem %s1, %s132
      %p134 = pneg %p60
      %p135 = pneg %p57
      %p136 = pneg %p86
      %p137 = pneg %p83
      %p138 = scmp.lt.s32.totalorder %s13, 1
      %s139 = scalar_select %p138, %s13, 1
      %s140 = smul.addr %s139, 4
      %s141 = scalar_lea.vmem %s2, %s140
      %p142 = scmp.lt.s32.totalorder %s13, 1
      %s143 = scalar_select %p142, %s13, 1
      %s144 = smul.addr %s143, 4
      %s145 = scalar_lea.vmem %s0, %s144
      %p146 = scmp.lt.s32.totalorder %s13, 1
      %s147 = scalar_select %p146, %s13, 1
      %s148 = scalar_lea.vmem %s1, %s147
      %p149 = scmp.lt.s32.totalorder %s13, 1
      %s150 = scalar_select %p149, %s13, 1
      %s151 = smul.addr %s150, 4
      %s152 = scalar_lea.vmem %s2, %s151
      %v154 = vld [vmem:[%s145] sm:$0xf]
      %v155 = vld [vmem:[%s148] sm:$0x1]
      %v157 = vperm.slane %v155, 0
      %v160 = vunpack.c.l.b16 %v154
      %v161 = vpack.c.b16 %v160, %v160
      %162 = vrot.lane.b32.xlu0 %v161, 96
      %v163 = vpop.permute.xlu0 %162
      %vm164 = vcmask 64512
      %v166 = vsel %vm164, %v154, 0
      %v169 = vsel %vm164, %v163, 0
      %171 = vmatpush.bf16.xpose.msra.mxu0 0
      %172 = vmatpush.bf16.xpose.msra.mxu0 0
      %173 = vmatpush.bf16.xpose.msra.mxu0 0
      %174 = vmatpush.bf16.xpose.msra.mxu0 0
      %175 = vmatpush.bf16.xpose.msra.mxu0 0
      %176 = vmatpush.bf16.xpose.msra.mxu0 0
      %177 = vmatpush.bf16.xpose.msra.mxu0 0
      %178 = vmatpush.bf16.xpose.msra.mxu0 %v169
      %179 = vmatmul.bf16.gmra.mxu0 %v166
      %v180 = vpop.f32.mrf.mxu0
      %v181 = vadd.f32 %v157, %v180
      %v182 = vpop.f32.mrf.mxu0
      %183 = vdwg.mxu0
      %v184 = vsel %vm164, %v181, -inf
      %185 = vmax.xlane.f32.xlu0 %v184
      %v186 = vpop.xlane.xlu0 %185
      %v187 = vsub.f32 %v181, %v186
      %v188 = vmul.f32 %v187, 1.442695
      %v189 = vpow.pop %v188
      %v190 = vsel %vm164, %v189, 0.0
      %191 = vadd.xlane.f32.xlu0 %v190
      %v192 = vpop.xlane.xlu0 %191
      %v193 = vpack.c.bf16 %v189, %v189
      %194 = vrot.lane.b32.xlu0 %v161, 64
      %v195 = vpop.permute.xlu0 %194
      %v197 = vsel %vm164, %v193, 0
      %vm199 = vcmask 1043456
      %v201 = vsel %vm199, %v195, 0
      %203 = vmatpush.bf16.msra.mxu0 0
      %204 = vmatpush.bf16.msra.mxu0 0
      %205 = vmatpush.bf16.msra.mxu0 0
      %206 = vmatpush.bf16.msra.mxu0 0
      %207 = vmatpush.bf16.msra.mxu0 0
      %208 = vmatpush.bf16.msra.mxu0 0
      %209 = vmatpush.bf16.msra.mxu0 0
      %210 = vmatpush.bf16.msra.mxu0 %v201
      %211 = vmatmul.bf16.gmra.mxu0 %v197
      %v212 = vpop.f32.mrf.mxu0
      %v213 = vadd.f32 0.0, %v212
      %v214 = vpop.f32.mrf.mxu0
      %215 = vdwg.mxu0
      %v216 = vrcp.pop %v192
      %v217 = vmul.f32 %v213, %v216
      %v218 = vpack.c.bf16 %v217, %v217
      %vm219 = vcmask 60416
      %220 = vst.msk [vmem:[%s152] sm:$0xf] %vm219, %v218
      %221 = vrot.lane.b32.xlu0 %v161, 120
      %v222 = vpop.permute.xlu0 %221
      %223 = vrot.lane.b32.xlu0 %v161, 88
      %v224 = vpop.permute.xlu0 %223
      %v226 = vsel %vm164, %v222, 0
      %v229 = vsel %vm164, %v224, 0
      %231 = vmatpush.bf16.xpose.msra.mxu0 0
      %232 = vmatpush.bf16.xpose.msra.mxu0 0
      %233 = vmatpush.bf16.xpose.msra.mxu0 0
      %234 = vmatpush.bf16.xpose.msra.mxu0 0
      %235 = vmatpush.bf16.xpose.msra.mxu0 0
      %236 = vmatpush.bf16.xpose.msra.mxu0 0
      %237 = vmatpush.bf16.xpose.msra.mxu0 0
      %238 = vmatpush.bf16.xpose.msra.mxu0 %v229
      %239 = vmatmul.bf16.gmra.mxu0 %v226
      %v240 = vpop.f32.mrf.mxu0
      %v241 = vadd.f32 %v157, %v240
      %v242 = vpop.f32.mrf.mxu0
      %243 = vdwg.mxu0
      %v244 = vsel %vm164, %v241, -inf
      %245 = vmax.xlane.f32.xlu0 %v244
      %v246 = vpop.xlane.xlu0 %245
      %v247 = vsub.f32 %v241, %v246
      %v248 = vmul.f32 %v247, 1.442695
      %v249 = vpow.pop %v248
      %v250 = vsel %vm164, %v249, 0.0
      %251 = vadd.xlane.f32.xlu0 %v250
      %v252 = vpop.xlane.xlu0 %251
      %v253 = vpack.c.bf16 %v249, %v249
      %254 = vrot.lane.b32.xlu0 %v161, 56
      %v255 = vpop.permute.xlu0 %254
      %v257 = vsel %vm164, %v253, 0
      %v260 = vsel %vm199, %v255, 0
      %262 = vmatpush.bf16.msra.mxu0 0
      %263 = vmatpush.bf16.msra.mxu0 0
      %264 = vmatpush.bf16.msra.mxu0 0
      %265 = vmatpush.bf16.msra.mxu0 0
      %266 = vmatpush.bf16.msra.mxu0 0
      %267 = vmatpush.bf16.msra.mxu0 0
      %268 = vmatpush.bf16.msra.mxu0 0
      %269 = vmatpush.bf16.msra.mxu0 %v260
      %270 = vmatmul.bf16.gmra.mxu0 %v257
      %v271 = vpop.f32.mrf.mxu0
      %v272 = vadd.f32 0.0, %v271
      %v273 = vpop.f32.mrf.mxu0
      %274 = vdwg.mxu0
      %v275 = vrcp.pop %v252
      %v276 = vmul.f32 %v272, %v275
      %v277 = vpack.c.bf16 %v276, %v276
      %279 = vrot.lane.b32.xlu0 %v277, 8
      %v280 = vpop.permute.xlu0 %279
      %vm282 = vcmask 126016
      %283 = vst.msk [vmem:[%s152] sm:$0xf] %vm282, %v280
      %284 = vrot.lane.b32.xlu0 %v161, 112
      %v285 = vpop.permute.xlu0 %284
      %286 = vrot.lane.b32.xlu0 %v161, 80
      %v287 = vpop.permute.xlu0 %286
      %v289 = vsel %vm164, %v285, 0
      %v292 = vsel %vm164, %v287, 0
      %294 = vmatpush.bf16.xpose.msra.mxu0 0
      %295 = vmatpush.bf16.xpose.msra.mxu0 0
      %296 = vmatpush.bf16.xpose.msra.mxu0 0
      %297 = vmatpush.bf16.xpose.msra.mxu0 0
      %298 = vmatpush.bf16.xpose.msra.mxu0 0
      %299 = vmatpush.bf16.xpose.msra.mxu0 0
      %300 = vmatpush.bf16.xpose.msra.mxu0 0
      %301 = vmatpush.bf16.xpose.msra.mxu0 %v292
      %302 = vmatmul.bf16.gmra.mxu0 %v289
      %v303 = vpop.f32.mrf.mxu0
      %v304 = vadd.f32 %v157, %v303
      %v305 = vpop.f32.mrf.mxu0
      %306 = vdwg.mxu0
      %v307 = vsel %vm164, %v304, -inf
      %308 = vmax.xlane.f32.xlu0 %v307
      %v309 = vpop.xlane.xlu0 %308
      %v310 = vsub.f32 %v304, %v309
      %v311 = vmul.f32 %v310, 1.442695
      %v312 = vpow.pop %v311
      %v313 = vsel %vm164, %v312, 0.0
      %314 = vadd.xlane.f32.xlu0 %v313
      %v315 = vpop.xlane.xlu0 %314
      %v316 = vpack.c.bf16 %v312, %v312
      %317 = vrot.lane.b32.xlu0 %v161, 48
      %v318 = vpop.permute.xlu0 %317
      %v320 = vsel %vm164, %v316, 0
      %v323 = vsel %vm199, %v318, 0
      %325 = vmatpush.bf16.msra.mxu0 0
      %326 = vmatpush.bf16.msra.mxu0 0
      %327 = vmatpush.bf16.msra.mxu0 0
      %328 = vmatpush.bf16.msra.mxu0 0
      %329 = vmatpush.bf16.msra.mxu0 0
      %330 = vmatpush.bf16.msra.mxu0 0
      %331 = vmatpush.bf16.msra.mxu0 0
      %332 = vmatpush.bf16.msra.mxu0 %v323
      %333 = vmatmul.bf16.gmra.mxu0 %v320
      %v334 = vpop.f32.mrf.mxu0
      %v335 = vadd.f32 0.0, %v334
      %v336 = vpop.f32.mrf.mxu0
      %337 = vdwg.mxu0
      %v338 = vrcp.pop %v315
      %v339 = vmul.f32 %v335, %v338
      %v340 = vpack.c.bf16 %v339, %v339
      %342 = vrot.lane.b32.xlu0 %v340, 16
      %v343 = vpop.permute.xlu0 %342
      %vm345 = vcmask 191616
      %346 = vst.msk [vmem:[%s152] sm:$0xf] %vm345, %v343
      %347 = vrot.lane.b32.xlu0 %v161, 104
      %v348 = vpop.permute.xlu0 %347
      %349 = vrot.lane.b32.xlu0 %v161, 72
      %v350 = vpop.permute.xlu0 %349
      %v352 = vsel %vm164, %v348, 0
      %v355 = vsel %vm164, %v350, 0
      %357 = vmatpush.bf16.xpose.msra.mxu0 0
      %358 = vmatpush.bf16.xpose.msra.mxu0 0
      %359 = vmatpush.bf16.xpose.msra.mxu0 0
      %360 = vmatpush.bf16.xpose.msra.mxu0 0
      %361 = vmatpush.bf16.xpose.msra.mxu0 0
      %362 = vmatpush.bf16.xpose.msra.mxu0 0
      %363 = vmatpush.bf16.xpose.msra.mxu0 0
      %364 = vmatpush.bf16.xpose.msra.mxu0 %v355
      %365 = vmatmul.bf16.gmra.mxu0 %v352
      %v366 = vpop.f32.mrf.mxu0
      %v367 = vadd.f32 %v157, %v366
      %v368 = vpop.f32.mrf.mxu0
      %369 = vdwg.mxu0
      %v370 = vsel %vm164, %v367, -inf
      %371 = vmax.xlane.f32.xlu0 %v370
      %v372 = vpop.xlane.xlu0 %371
      %v373 = vsub.f32 %v367, %v372
      %v374 = vmul.f32 %v373, 1.442695
      %v375 = vpow.pop %v374
      %v376 = vsel %vm164, %v375, 0.0
      %377 = vadd.xlane.f32.xlu0 %v376
      %v378 = vpop.xlane.xlu0 %377
      %v379 = vpack.c.bf16 %v375, %v375
      %380 = vrot.lane.b32.xlu0 %v161, 40
      %v381 = vpop.permute.xlu0 %380
      %v383 = vsel %vm164, %v379, 0
      %v386 = vsel %vm199, %v381, 0
      %388 = vmatpush.bf16.msra.mxu0 0
      %389 = vmatpush.bf16.msra.mxu0 0
      %390 = vmatpush.bf16.msra.mxu0 0
      %391 = vmatpush.bf16.msra.mxu0 0
      %392 = vmatpush.bf16.msra.mxu0 0
      %393 = vmatpush.bf16.msra.mxu0 0
      %394 = vmatpush.bf16.msra.mxu0 0
      %395 = vmatpush.bf16.msra.mxu0 %v386
      %396 = vmatmul.bf16.gmra.mxu0 %v383
      %v397 = vpop.f32.mrf.mxu0
      %v398 = vadd.f32 0.0, %v397
      %v399 = vpop.f32.mrf.mxu0
      %400 = vdwg.mxu0
      %v401 = vrcp.pop %v378
      %v402 = vmul.f32 %v398, %v401
      %v403 = vpack.c.bf16 %v402, %v402
      %405 = vrot.lane.b32.xlu0 %v403, 24
      %v406 = vpop.permute.xlu0 %405
      %vm408 = vcmask 257216
      %409 = vst.msk [vmem:[%s152] sm:$0xf] %vm408, %v406
      %p410 = scmp.lt.s32.totalorder %s13, 1
      %s411 = scalar_select %p410, %s13, 1
      %s412 = smul.addr %s411, 4
      %s413 = scalar_lea.vmem %s2, %s412
      // Predicated region
      $region29: #{_forward_impl.5} parent=27 // pred_check
        %p414 = pneg %p83
      $region30: #{_forward_impl.5} parent=27 // pred_check_branch
        %416 = sbr.rel (%p414) target = $region32
      $region31: #{_forward_impl.5} parent=27 // pred_region
        _
      $region32: #{_forward_impl.5} parent=27 // pred_fallthru
        _
    $region28: #{_forward_impl.5} parent=5 // pred_fallthru
      _
    %p417 = scmp.le.s32.totalorder 2, %s8
    // Predicated region
    $region33: #{_forward_impl.5} parent=5 // pred_check
      %p418 = pneg %p417
    $region34: #{_forward_impl.5} parent=5 // pred_check_branch
      %420 = sbr.rel (%p418) target = $region36
    $region35: #{_forward_impl.5} parent=5 // pred_region
      %s421 = ssub.s32 %s8, 2
      // Predicated region
      $region37: #{_forward_impl.5} parent=35 // pred_check
        %p422 = pneg %p89
      $region38: #{_forward_impl.5} parent=35 // pred_check_branch
        %424 = sbr.rel (%p422) target = $region40
      $region39: #{_forward_impl.5} parent=35 // pred_region
        %p425 = scmp.lt.s32.totalorder %s14, 1
        %s426 = scalar_select %p425, %s14, 1
        %s427 = smul.addr %s426, 4
        %s428 = scalar_lea.vmem %s2, %s427
      $region40: #{_forward_impl.5} parent=35 // pred_fallthru
        _
    $region36: #{_forward_impl.5} parent=5 // pred_fallthru
      _
  $region6: #{_forward_impl.5} parent=0 // loop_footer
    %s12 = sadd.s32 1, %s8
  $region7: #{_forward_impl.5} parent=0 // loop_footer_branch
    %7 = sbr.rel target = $region3
  $region8: #{_forward_impl.5} parent=0 // loop_exit
    _

// kernel: _forward_impl.7
$region0: #{_forward_impl.7}
  #allocation0 [shape = 'u32[]', space=smem, size = 0x4, offset = 0x4, fixed_abs, tag = 'smem constant byte address 0x4 - core index']
  #allocation1 [shape = 'u32[72,128]{1,0:T(1,128)}', space=vmem, size = 0x9000, scoped, tag = 'internal scratch']
  %s0 = inlined_call_operand.vmem [shape: f32[16,32], index: 0, kind: input, shape index: {}]
  %s1 = inlined_call_operand.vmem [shape: bf16[32,64], index: 1, kind: input, shape index: {}]
  %s2 = inlined_call_operand.vmem [shape: f32[1,64], index: 2, kind: input, shape index: {}]
  %s3 = inlined_call_operand.vmem [shape: bf16[64,32], index: 3, kind: input, shape index: {}]
  %s4 = inlined_call_operand.vmem [shape: f32[1,32], index: 4, kind: input, shape index: {}]
  %s5 = inlined_call_operand.vmem [shape: f32[1,32], index: 5, kind: input, shape index: {}]
  %s6 = inlined_call_operand.vmem [shape: f32[1,32], index: 6, kind: input, shape index: {}]
  %s7 = inlined_call_operand.hbm [shape: f32[16,32], index: 7, kind: output, shape index: {}]
  %s8 = sld [smem:[#allocation0]]
  $region38: #{_forward_impl.7} parent=0
    _
  %s10 = ssub.s32 1, %s8
  %s11 = scalar_select 0, %s10, %s8
  $region1: #{_forward_impl.7} parent=0
    #allocation2 [shape = 'u8[8192]{0}', space=vmem, size = 0x2000, scoped, tag = 'output window, operand 0, single buffered']
    #allocation3 [shape = 's32[1]{0}', space=sflag, size = 0x4, scoped, tag = 'scoped memory for _forward_impl.7']
    %12 = vsyncpa [#allocation3], 0
    // Predicated region
    $region2: #{_forward_impl.7} parent=1 // pred_check
      _
    $region3: #{_forward_impl.7} parent=1 // pred_check_branch
      %14 = sbr.rel (0) target = $region5
    $region4: #{_forward_impl.7} parent=1 // pred_region
      _
    $region5: #{_forward_impl.7} parent=1 // pred_fallthru
      _
    // Predicated region
    $region6: #{_forward_impl.7} parent=1 // pred_check
      _
    $region7: #{_forward_impl.7} parent=1 // pred_check_branch
      %16 = sbr.rel (0) target = $region9
    $region8: #{_forward_impl.7} parent=1 // pred_region
      _
    $region9: #{_forward_impl.7} parent=1 // pred_fallthru
      _
    // Predicated region
    $region10: #{_forward_impl.7} parent=1 // pred_check
      _
    $region11: #{_forward_impl.7} parent=1 // pred_check_branch
      %18 = sbr.rel (0) target = $region13
    $region12: #{_forward_impl.7} parent=1 // pred_region
      _
    $region13: #{_forward_impl.7} parent=1 // pred_fallthru
      _
    // Predicated region
    $region14: #{_forward_impl.7} parent=1 // pred_check
      _
    $region15: #{_forward_impl.7} parent=1 // pred_check_branch
      %20 = sbr.rel (0) target = $region17
    $region16: #{_forward_impl.7} parent=1 // pred_region
      _
    $region17: #{_forward_impl.7} parent=1 // pred_fallthru
      _
    // Predicated region
    $region18: #{_forward_impl.7} parent=1 // pred_check
      _
    $region19: #{_forward_impl.7} parent=1 // pred_check_branch
      %22 = sbr.rel (0) target = $region21
    $region20: #{_forward_impl.7} parent=1 // pred_region
      _
    $region21: #{_forward_impl.7} parent=1 // pred_fallthru
      _
    // Predicated region
    $region22: #{_forward_impl.7} parent=1 // pred_check
      _
    $region23: #{_forward_impl.7} parent=1 // pred_check_branch
      %24 = sbr.rel (0) target = $region25
    $region24: #{_forward_impl.7} parent=1 // pred_region
      _
    $region25: #{_forward_impl.7} parent=1 // pred_fallthru
      _
    // Predicated region
    $region26: #{_forward_impl.7} parent=1 // pred_check
      _
    $region27: #{_forward_impl.7} parent=1 // pred_check_branch
      %26 = sbr.rel (0) target = $region29
    $region28: #{_forward_impl.7} parent=1 // pred_region
      _
    $region29: #{_forward_impl.7} parent=1 // pred_fallthru
      _
    %v28 = vld [vmem:[%s0] sm:$0xff]
    %v29 = vld [vmem:[%s0 + $0x8] sm:$0xff]
    %v30 = vpack.c.bf16 %v29, %v28
    %v31 = vld [vmem:[%s1] sm:$0xf]
    %v32 = vld [vmem:[%s1 + $0x4] sm:$0xf]
    %v33 = vld [vmem:[%s1 + $0x8] sm:$0xf]
    %v34 = vld [vmem:[%s1 + $0xc] sm:$0xf]
    %v35 = vld [vmem:[%s2] sm:$0x1]
    %v37 = vperm.slane %v35, 0
    %v43 = vunpack.c.l.b16 %v31
    %v44 = vunpack.c.l.b16 %v32
    %v45 = vunpack.c.l.b16 %v33
    %v46 = vunpack.c.l.b16 %v34
    %v47 = vpack.c.b16 %v44, %v43
    %v48 = vpack.c.b16 %v46, %v45
    %vm51 = vcmask 261120
    %v53 = vsel %vm51, %v30, 0
    %55 = vmatpush.bf16.msra.mxu0 0
    %56 = vmatpush.bf16.msra.mxu0 0
    %57 = vmatpush.bf16.msra.mxu0 0
    %58 = vmatpush.bf16.msra.mxu0 0
    %59 = vmatpush.bf16.msra.mxu0 0
    %60 = vmatpush.bf16.msra.mxu0 0
    %61 = vmatpush.bf16.msra.mxu0 %v48
    %62 = vmatpush.bf16.msra.mxu0 %v47
    %63 = vmatmul.bf16.gmra.mxu0 %v53
    %v64 = vpop.f32.mrf.mxu0
    %v65 = vadd.f32 %v37, %v64
    %v66 = vpop.f32.mrf.mxu0
    %v67 = vadd.f32 %v37, %v66
    %68 = vdwg.mxu0
    %v69 = vmul.f32 %v65, 0.5
    %v70 = vmul.f32 %v67, 0.5
    %v71 = vmul.f32 %v65, 0.044715
    %v72 = vmul.f32 %v67, 0.044715
    %v73 = vmul.f32 %v71, %v65
    %v74 = vmul.f32 %v72, %v67
    %v75 = vmul.f32 %v73, %v65
    %v76 = vmul.f32 %v74, %v67
    %v77 = vadd.f32 %v65, %v75
    %v78 = vadd.f32 %v67, %v76
    %v79 = vmul.f32 %v77, 0.7978846
    %v80 = vmul.f32 %v78, 0.7978846
    %v81 = vtanh.pop %v79
    %v82 = vtanh.pop %v80
    %v83 = vadd.f32 %v81, 1.0
    %v84 = vadd.f32 %v82, 1.0
    %v85 = vmul.f32 %v69, %v83
    %v86 = vmul.f32 %v70, %v84
    %v87 = vpack.c.bf16 %v86, %v85
    %v88 = vld [vmem:[%s3] sm:$0xf]
    %v89 = vld [vmem:[%s3 + $0x4] sm:$0xf]
    %v90 = vld [vmem:[%s3 + $0x8] sm:$0xf]
    %v91 = vld [vmem:[%s3 + $0xc] sm:$0xf]
    %v92 = vld [vmem:[%s3 + $0x10] sm:$0xf]
    %v93 = vld [vmem:[%s3 + $0x14] sm:$0xf]
    %v94 = vld [vmem:[%s3 + $0x18] sm:$0xf]
    %v95 = vld [vmem:[%s3 + $0x1c] sm:$0xf]
    %v96 = vld [vmem:[%s4] sm:$0x1]
    %v98 = vperm.slane %v96, 0
    %v108 = vunpack.c.l.b16 %v88
    %v109 = vunpack.c.l.b16 %v89
    %v110 = vunpack.c.l.b16 %v90
    %v111 = vunpack.c.l.b16 %v91
    %v112 = vunpack.c.l.b16 %v92
    %v113 = vunpack.c.l.b16 %v93
    %v114 = vunpack.c.l.b16 %v94
    %v115 = vunpack.c.l.b16 %v95
    %v116 = vpack.c.b16 %v109, %v108
    %v117 = vpack.c.b16 %v111, %v110
    %v118 = vpack.c.b16 %v113, %v112
    %v119 = vpack.c.b16 %v115, %v114
    %vm124 = vcmask 523264
    %v126 = vsel %vm124, %v87, 0
    %128 = vmatpush.bf16.msra.mxu0 0
    %129 = vmatpush.bf16.msra.mxu0 0
    %130 = vmatpush.bf16.msra.mxu0 0
    %131 = vmatpush.bf16.msra.mxu0 0
    %132 = vmatpush.bf16.msra.mxu0 %v119
    %133 = vmatpush.bf16.msra.mxu0 %v118
    %134 = vmatpush.bf16.msra.mxu0 %v117
    %135 = vmatpush.bf16.msra.mxu0 %v116
    %136 = vmatmul.bf16.gmra.mxu0 %v126
    %v137 = vpop.f32.mrf.mxu0
    %v138 = vadd.f32 %v98, %v137
    %v139 = vpop.f32.mrf.mxu0
    %v140 = vadd.f32 %v98, %v139
    %141 = vdwg.mxu0
    %v142 = vadd.f32 %v138, %v28
    %v143 = vadd.f32 %v140, %v29
    %v144 = vld [vmem:[%s5] sm:$0x1]
    %v145 = vld [vmem:[%s6] sm:$0x1]
    %v146 = vsel %vm51, %v142, 0.0
    %147 = vadd.xlane.f32.xlu0 %v146
    %v148 = vpop.xlane.xlu0 %147
    %v149 = vsel %vm51, %v143, 0.0
    %150 = vadd.xlane.f32.xlu0 %v149
    %v151 = vpop.xlane.xlu0 %150
    %v152 = vrcp.pop 32.0
    %v153 = vmul.f32 32.0, %v152
    %v154 = vsub.f32 1.0, %v153
    %v155 = vmul.f32 %v152, %v154
    %v156 = vadd.f32 %v152, %v155
    %vm157 = vweird.f32 %v152
    %v158 = vsel %vm157, %v152, %v156
    %v159 = vmul.f32 %v148, %v158
    %v160 = vmul.f32 %v151, %v158
    %v161 = vsub.f32 %v142, %v159
    %v162 = vsub.f32 %v143, %v160
    %v163 = vmul.f32 %v161, %v161
    %v164 = vmul.f32 %v162, %v162
    %v165 = vsel %vm51, %v163, 0.0
    %166 = vadd.xlane.f32.xlu0 %v165
    %v167 = vpop.xlane.xlu0 %166
    %v168 = vsel %vm51, %v164, 0.0
    %169 = vadd.xlane.f32.xlu0 %v168
    %v170 = vpop.xlane.xlu0 %169
    %v171 = vmul.f32 %v167, %v158
    %v172 = vmul.f32 %v170, %v158
    %v173 = vadd.f32 %v171, 1e-12
    %v174 = vadd.f32 %v172, 1e-12
    %v175 = vrsqrt.pop %v173
    %v176 = vmul.f32 %v175, %v173
    %v177 = vmul.f32 %v176, %v175
    %v178 = vmul.f32 0.5, %v177
    %v179 = vsub.f32 1.5, %v178
    %v180 = vmul.f32 %v175, %v179
    %vm181 = vweird.f32 %v173
    %vm182 = vweird.f32 %v175
    %vm183 = vmor %vm181, %vm182
    %v184 = vsel %vm183, %v175, %v180
    %v185 = vrsqrt.pop %v174
    %v186 = vmul.f32 %v185, %v174
    %v187 = vmul.f32 %v186, %v185
    %v188 = vmul.f32 0.5, %v187
    %v189 = vsub.f32 1.5, %v188
    %v190 = vmul.f32 %v185, %v189
    %vm191 = vweird.f32 %v174
    %vm192 = vweird.f32 %v185
    %vm193 = vmor %vm191, %vm192
    %v194 = vsel %vm193, %v185, %v190
    %v195 = vmul.f32 %v161, %v184
    %v196 = vmul.f32 %v162, %v194
    %v198 = vperm.slane %v144, 0
    %v200 = vmul.f32 %v195, %v198
    %v201 = vmul.f32 %v196, %v198
    %v203 = vperm.slane %v145, 0
    %v205 = vadd.f32 %v200, %v203
    %v206 = vadd.f32 %v201, %v203
    %207 = vst.msk [vmem:[#allocation2] sm:$0xff] %vm51, %v205
    %208 = vst.msk [vmem:[#allocation2 + $0x8] sm:$0xff] %vm51, %v206
    // Predicated region
    $region30: #{_forward_impl.7} parent=1 // pred_check
      _
    $region31: #{_forward_impl.7} parent=1 // pred_check_branch
      %210 = sbr.rel (0) target = $region33
    $region32: #{_forward_impl.7} parent=1 // pred_region
      %212 = vsyncadd [#allocation3], 0
      %s213 = sshll.u32 [#allocation2], 4
      %s214 = int_to_ptr.vmem [resolvable:$true] %s213
      %s215 = sshll.u32 %s7, 4
      %s216 = int_to_ptr.hbm [resolvable:$true] %s215
      %221 = dma.vmem_to_hbm [thread:$0]  %s214, 256, %s216, [#allocation3], 128, 128, 8
    $region33: #{_forward_impl.7} parent=1 // pred_fallthru
      _
    // Predicated region
    $region34: #{_forward_impl.7} parent=1 // pred_check
      _
    $region35: #{_forward_impl.7} parent=1 // pred_check_branch
      %223 = sbr.rel (0) target = $region37
    $region36: #{_forward_impl.7} parent=1 // pred_region
      %225 = dma.done [#allocation3], 256
    $region37: #{_forward_impl.7} parent=1 // pred_fallthru
      _
    %226 = vsyncpa [#allocation3], 1

</llo_original>
